<compile_context>
chip_gen: v5e
topology: v5e:2x2
jax: 0.10.0
libtpu: 0.0.40
codegen_flags: <defaults>
</compile_context>

<pallas_src>
import functools

import jax
import jax.numpy as jnp
from jax.experimental import pallas as pl
from jax.experimental.pallas import tpu as pltpu

F32 = jnp.float32


# --------------------------------------------------------------------------
# Generation-aware compiler params
# --------------------------------------------------------------------------
def _vmem_limit_bytes():
    # v5e/v6e: 128 MiB physical VMEM per core; v7x: 64 MiB. Leave headroom.
    try:
        cap = int(pltpu.get_tpu_info().vmem_capacity_bytes)
    except Exception:
        cap = 64 * 1024 * 1024  # conservative (v7x-sized) fallback
    return min(100 * 1024 * 1024, (cap * 3) // 4)


_VMEM_LIMIT = _vmem_limit_bytes()


def _cp(dim_sem):
    return pltpu.CompilerParams(dimension_semantics=dim_sem,
                                vmem_limit_bytes=_VMEM_LIMIT)


def _pick_tile_h(H, W, K, target_rows=64, max_tile_bytes=4 << 20):
    """Largest divisor of H that is <= target_rows and keeps one input tile
    (tile_h * W * K * 4 bytes) under max_tile_bytes (VMEM friendly on v7x)."""
    cap = max(1, max_tile_bytes // max(1, W * K * 4))
    t = max(1, min(H, target_rows, cap))
    while H % t:
        t -= 1
    return t


# --------------------------------------------------------------------------
# WeightStandardizedConv2d 3x3 (pad=1) + fused per-tile GroupNorm partial stats
# One MXU matmul per (batch, row-tile): (tile_h*W, 9*Cin) @ (9*Cin, Cout)
# --------------------------------------------------------------------------
def _conv3x3_stats_kernel(x_ref, w_ref, b_ref, y_ref, ps_ref, pss_ref):
    # x_ref : (1, TH, W, 9*Cin) im2col tile
    # w_ref : (9*Cin, Cout)      b_ref: (1, Cout)
    # y_ref : (1, TH, W, Cout)
    # ps_ref/pss_ref: (1, 1, 8, Cout) partial sum / sum-of-squares (row 0..7 identical)
    th, wdt, k = x_ref.shape[1], x_ref.shape[2], x_ref.shape[3]
    cout = y_ref.shape[3]
    x = x_ref[...].reshape(th * wdt, k)
    acc = jnp.dot(x, w_ref[...], preferred_element_type=F32) + b_ref[...]
    y_ref[...] = acc.reshape(1, th, wdt, cout).astype(y_ref.dtype)
    s = jnp.sum(acc, axis=0, keepdims=True)            # (1, Cout)
    ss = jnp.sum(acc * acc, axis=0, keepdims=True)     # (1, Cout)
    ps_ref[...] = jnp.broadcast_to(s.reshape(1, 1, 1, cout), (1, 1, 8, cout))
    pss_ref[...] = jnp.broadcast_to(ss.reshape(1, 1, 1, cout), (1, 1, 8, cout))


def conv3x3_ws_gnstats(x_nhwc, w_oihw, bias):
    """Weight-standardized 3x3 conv (padding=1) in NHWC.
    Returns (y_nhwc, per-(b,c) sum, per-(b,c) sum-of-squares)."""
    B, H, W, Cin = x_nhwc.shape
    Cout = w_oihw.shape[0]

    # Weight standardization: tiny parameter prep, not the hot path.
    mean = jnp.mean(w_oihw, axis=(1, 2, 3), keepdims=True)
    var = jnp.mean((w_oihw - mean) ** 2, axis=(1, 2, 3), keepdims=True)
    w_std = (w_oihw - mean) * jax.lax.rsqrt(var + 1e-5)   # eps for float32 inputs
    # matmul weight: K index = (dy*3 + dx)*Cin + ci  (matches im2col layout below)
    wmat = jnp.transpose(w_std, (2, 3, 1, 0)).reshape(9 * Cin, Cout).astype(F32)

    # 9-tap im2col (layout plumbing done once by XLA): K = 9*Cin feeds the MXU
    # contraction; removes in-kernel sublane shifts, halos and tap-loop spills.
    xp = jnp.pad(x_nhwc, ((0, 0), (1, 1), (1, 1), (0, 0)))
    xi = jnp.concatenate(
        [xp[:, dy:dy + H, dx:dx + W, :] for dy in range(3) for dx in range(3)],
        axis=-1)                                            # (B, H, W, 9*Cin)

    K = 9 * Cin
    th = _pick_tile_h(H, W, K)
    T = H // th

    y, psum, psumsq = pl.pallas_call(
        _conv3x3_stats_kernel,
        out_shape=(
            jax.ShapeDtypeStruct((B, H, W, Cout), x_nhwc.dtype),
            jax.ShapeDtypeStruct((B, T, 8, Cout), F32),
            jax.ShapeDtypeStruct((B, T, 8, Cout), F32),
        ),
        grid=(B, T),
        in_specs=[
            pl.BlockSpec((1, th, W, K), lambda b, t: (b, t, 0, 0)),
            pl.BlockSpec((K, Cout), lambda b, t: (0, 0)),
            pl.BlockSpec((1, Cout), lambda b, t: (0, 0)),
        ],
        out_specs=[
            pl.BlockSpec((1, th, W, Cout), lambda b, t: (b, t, 0, 0)),
            pl.BlockSpec((1, 1, 8, Cout), lambda b, t: (b, t, 0, 0)),
            pl.BlockSpec((1, 1, 8, Cout), lambda b, t: (b, t, 0, 0)),
        ],
        compiler_params=_cp(("parallel", "parallel")),
    )(xi, wmat, bias.reshape(1, Cout).astype(F32))

    # Reduce per-tile partials to per-(batch, channel) sums (tiny (B,T,C) work).
    return y, psum[:, :, 0, :].sum(axis=1), psumsq[:, :, 0, :].sum(axis=1)


# --------------------------------------------------------------------------
# Per-(batch, channel) affine (GroupNorm folded, optional scale_shift) + SiLU
# --------------------------------------------------------------------------
def _affine_silu_kernel(x_ref, a_ref, b_ref, o_ref):
    # x_ref: (1, TH, W, C)    a_ref/b_ref: (1, 1, C)
    c = x_ref.shape[3]
    x = x_ref[...].astype(F32)
    z = x * a_ref[...].reshape(1, 1, 1, c) + b_ref[...].reshape(1, 1, 1, c)
    o_ref[...] = (z * jax.nn.sigmoid(z)).astype(o_ref.dtype)   # SiLU


def affine_silu_nhwc(x_nhwc, a_bc, b_bc):
    B, H, W, C = x_nhwc.shape
    th = _pick_tile_h(H, W, C)
    T = H // th
    return pl.pallas_call(
        _affine_silu_kernel,
        out_shape=jax.ShapeDtypeStruct((B, H, W, C), x_nhwc.dtype),
        grid=(B, T),
        in_specs=[
            pl.BlockSpec((1, th, W, C), lambda b, t: (b, t, 0, 0)),
            pl.BlockSpec((1, 1, C), lambda b, t: (b, 0, 0)),
            pl.BlockSpec((1, 1, C), lambda b, t: (b, 0, 0)),
        ],
        out_specs=pl.BlockSpec((1, th, W, C), lambda b, t: (b, t, 0, 0)),
        compiler_params=_cp(("parallel", "parallel")),
    )(x_nhwc, a_bc.reshape(B, 1, C).astype(F32), b_bc.reshape(B, 1, C).astype(F32))


# --------------------------------------------------------------------------
# Block forward
# --------------------------------------------------------------------------
def block_forward(params, x_nchw, scale_shift=None, groups=8):
    """Pallas forward of `Block`: WSConv3x3(pad=1) -> GroupNorm(groups)
    [-> x*(scale+1)+shift] -> SiLU.   x_nchw: (B, Cin, H, W) float32.
    scale_shift: optional (scale, shift), each broadcastable to (B, Cout, 1, 1).
    Returns (B, Cout, H, W)."""
    B, _, H, W = x_nchw.shape
    Cout = params["conv_w"].shape[0]
    cpg = Cout // groups

    x_nhwc = jnp.transpose(x_nchw, (0, 2, 3, 1))
    y, s_c, ss_c = conv3x3_ws_gnstats(x_nhwc, params["conv_w"], params["conv_b"])

    # GroupNorm statistics from the fused per-tile sums (tiny (B, C)-sized math).
    # NOTE: E[x^2]-E[x]^2 in f32; fine at these magnitudes (weights standardized).
    n = float(H * W * cpg)
    mean_g = s_c.reshape(B, groups, cpg).sum(axis=-1) / n
    var_g = jnp.maximum(ss_c.reshape(B, groups, cpg).sum(axis=-1) / n
                        - mean_g * mean_g, 0.0)
    inv_g = jax.lax.rsqrt(var_g + 1e-5)                 # GroupNorm default eps
    mean_c = jnp.repeat(mean_g, cpg, axis=1)            # (B, C)
    inv_c = jnp.repeat(inv_g, cpg, axis=1)              # (B, C)

    # Fold GroupNorm affine (and optional scale_shift) into per-(b, c) a, b.
    a = inv_c * params["gn_g"][None, :]
    b = params["gn_b"][None, :] - mean_c * a
    if scale_shift is not None:
        scale, shift = scale_shift
        scale = jnp.broadcast_to(scale, (B, Cout, 1, 1)).reshape(B, Cout)
        shift = jnp.broadcast_to(shift, (B, Cout, 1, 1)).reshape(B, Cout)
        a = a * (scale + 1.0)
        b = b * (scale + 1.0) + shift

    out = affine_silu_nhwc(y, a, b)
    return jnp.transpose(out, (0, 3, 1, 2))


# --------------------------------------------------------------------------
# Pure-JAX reference (for a loose numerical sanity check)
# --------------------------------------------------------------------------
def _reference_forward(params, x, scale_shift=None, groups=8):
    w = params["conv_w"].astype(F32)
    mean = jnp.mean(w, axis=(1, 2, 3), keepdims=True)
    var = jnp.mean((w - mean) ** 2, axis=(1, 2, 3), keepdims=True)
    w_std = (w - mean) * jax.lax.rsqrt(var + 1e-5)
    y = jax.lax.conv_general_dilated(
        x, w_std, window_strides=(1, 1), padding=((1, 1), (1, 1)),
        dimension_numbers=("NCHW", "OIHW", "NCHW"),
        precision=jax.lax.Precision.HIGHEST)
    y = y + params["conv_b"].reshape(1, -1, 1, 1)
    B, C, H, W = y.shape
    yg = y.reshape(B, groups, C // groups, H, W)
    mu = jnp.mean(yg, axis=(2, 3, 4), keepdims=True)
    vr = jnp.mean((yg - mu) ** 2, axis=(2, 3, 4), keepdims=True)
    yn = ((yg - mu) * jax.lax.rsqrt(vr + 1e-5)).reshape(B, C, H, W)
    yn = yn * params["gn_g"].reshape(1, -1, 1, 1) + params["gn_b"].reshape(1, -1, 1, 1)
    if scale_shift is not None:
        scale, shift = scale_shift
        yn = yn * (scale + 1.0) + shift
    return yn * jax.nn.sigmoid(yn)


if __name__ == "__main__":
    key = jax.random.PRNGKey(0)
    kx, kw, kb, kg, kbe, ks, ksh = jax.random.split(key, 7)
    B, Cin, H, W = 2, 4, 16, 16
    Cout, groups = 32, 8

    x = jax.random.normal(kx, (B, Cin, H, W), dtype=F32)
    params = {
        "conv_w": 0.2 * jax.random.normal(kw, (Cout, Cin, 3, 3), dtype=F32),
        "conv_b": 0.1 * jax.random.normal(kb, (Cout,), dtype=F32),
        "gn_g": 1.0 + 0.1 * jax.random.normal(kg, (Cout,), dtype=F32),
        "gn_b": 0.1 * jax.random.normal(kbe, (Cout,), dtype=F32),
    }

    fwd = jax.jit(functools.partial(block_forward, groups=groups))
    y = jax.block_until_ready(fwd(params, x))
    assert y.shape == (B, Cout, H, W), y.shape
    assert bool(jnp.all(jnp.isfinite(y)))
    y_ref = _reference_forward(params, x, groups=groups)
    assert float(jnp.max(jnp.abs(y - y_ref))) < 5e-2

    # scale_shift branch (time-embedding conditioning path of the DDPM UNet)
    scale = 0.2 * jax.random.normal(ks, (B, Cout, 1, 1), dtype=F32)
    shift = 0.2 * jax.random.normal(ksh, (B, Cout, 1, 1), dtype=F32)
    y2 = jax.block_until_ready(block_forward(params, x, (scale, shift), groups=groups))
    assert y2.shape == (B, Cout, H, W), y2.shape
    assert bool(jnp.all(jnp.isfinite(y2)))
    y2_ref = _reference_forward(params, x, (scale, shift), groups=groups)
    assert float(jnp.max(jnp.abs(y2 - y2_ref))) < 5e-2

    print("KERNEL_OK")
</pallas_src>

<mosaic_0001>
module attributes {stable_mosaic.version = 11 : i64} {
  func.func @_conv3x3_stats_kernel(%arg0: i32, %arg1: i32, %arg2: memref<1x16x16x36xf32, #tpu.memory_space<vmem>>, %arg3: memref<36x32xf32, #tpu.memory_space<vmem>>, %arg4: memref<1x32xf32, #tpu.memory_space<vmem>>, %arg5: memref<1x16x16x32xf32, #tpu.memory_space<vmem>>, %arg6: memref<1x1x8x32xf32, #tpu.memory_space<vmem>>, %arg7: memref<1x1x8x32xf32, #tpu.memory_space<vmem>>) attributes {dimension_semantics = [#tpu.dimension_semantics<parallel>, #tpu.dimension_semantics<parallel>], iteration_bounds = array<i64: 2, 1>, scalar_prefetch = 0 : i64, scratch_operands = 0 : i64, tpu.core_type = #tpu.core_type<tc>, window_params = [{transform_indices = @transform_0, window_bounds = array<i64: 1, 16, 16, 36>}, {pipeline_mode = #tpu.pipeline_mode<synchronous>, transform_indices = @transform_1, window_bounds = array<i64: 36, 32>}, {pipeline_mode = #tpu.pipeline_mode<synchronous>, transform_indices = @transform_2, window_bounds = array<i64: 1, 32>}, {transform_indices = @transform_3, window_bounds = array<i64: 1, 16, 16, 32>}, {transform_indices = @transform_4, window_bounds = array<i64: 1, 1, 8, 32>}, {transform_indices = @transform_5, window_bounds = array<i64: 1, 1, 8, 32>}]} {
    %c0 = arith.constant 0 : index
    %c0_0 = arith.constant 0 : index
    %c0_1 = arith.constant 0 : index
    %c0_2 = arith.constant 0 : index
    %0 = vector.load %arg2[%c0, %c0_0, %c0_1, %c0_2] : memref<1x16x16x36xf32, #tpu.memory_space<vmem>>, vector<1x16x16x36xf32>
    %1 = vector.shape_cast %0 : vector<1x16x16x36xf32> to vector<256x36xf32>
    %c0_3 = arith.constant 0 : index
    %c0_4 = arith.constant 0 : index
    %2 = vector.load %arg3[%c0_3, %c0_4] : memref<36x32xf32, #tpu.memory_space<vmem>>, vector<36x32xf32>
    %cst = arith.constant dense<0.000000e+00> : vector<256x32xf32>
    %3 = tpu.matmul %1, %2, %cst {dimension_numbers = #tpu.dot_dimension_numbers<[1], [0], [0], [1], [0, 0, 1, 1], [], []>} : vector<256x36xf32>, vector<36x32xf32>, vector<256x32xf32> -> vector<256x32xf32>
    %c0_5 = arith.constant 0 : index
    %c0_6 = arith.constant 0 : index
    %4 = vector.load %arg4[%c0_5, %c0_6] : memref<1x32xf32, #tpu.memory_space<vmem>>, vector<1x32xf32>
    %5 = vector.broadcast %4 : vector<1x32xf32> to vector<256x32xf32>
    %6 = arith.addf %3, %5 : vector<256x32xf32>
    %7 = vector.shape_cast %6 : vector<256x32xf32> to vector<1x16x16x32xf32>
    %c0_7 = arith.constant 0 : index
    %c0_8 = arith.constant 0 : index
    %c0_9 = arith.constant 0 : index
    %c0_10 = arith.constant 0 : index
    %8 = vector.load %arg5[%c0_7, %c0_8, %c0_9, %c0_10] : memref<1x16x16x32xf32, #tpu.memory_space<vmem>>, vector<1x16x16x32xf32>
    tpu.vector_store %arg5[%c0_7, %c0_8, %c0_9, %c0_10], %7 {strides = array<i32>} : memref<1x16x16x32xf32, #tpu.memory_space<vmem>>, vector<1x16x16x32xf32>,
    %cst_11 = arith.constant dense<0.000000e+00> : vector<32xf32>
    %9 = vector.multi_reduction <add>, %6, %cst_11 [0] : vector<256x32xf32> to vector<32xf32>
    %10 = vector.shape_cast %9 : vector<32xf32> to vector<1x32xf32>
    %11 = arith.mulf %6, %6 : vector<256x32xf32>
    %cst_12 = arith.constant dense<0.000000e+00> : vector<32xf32>
    %12 = vector.multi_reduction <add>, %11, %cst_12 [0] : vector<256x32xf32> to vector<32xf32>
    %13 = vector.shape_cast %12 : vector<32xf32> to vector<1x32xf32>
    %14 = vector.shape_cast %10 : vector<1x32xf32> to vector<1x1x1x32xf32>
    %15 = vector.shape_cast %14 : vector<1x1x1x32xf32> to vector<1x1x1x32xf32>
    %16 = vector.broadcast %15 : vector<1x1x1x32xf32> to vector<1x1x8x32xf32>
    %c0_13 = arith.constant 0 : index
    %c0_14 = arith.constant 0 : index
    %c0_15 = arith.constant 0 : index
    %c0_16 = arith.constant 0 : index
    %17 = vector.load %arg6[%c0_13, %c0_14, %c0_15, %c0_16] : memref<1x1x8x32xf32, #tpu.memory_space<vmem>>, vector<1x1x8x32xf32>
    tpu.vector_store %arg6[%c0_13, %c0_14, %c0_15, %c0_16], %16 {strides = array<i32>} : memref<1x1x8x32xf32, #tpu.memory_space<vmem>>, vector<1x1x8x32xf32>,
    %18 = vector.shape_cast %13 : vector<1x32xf32> to vector<1x1x1x32xf32>
    %19 = vector.shape_cast %18 : vector<1x1x1x32xf32> to vector<1x1x1x32xf32>
    %20 = vector.broadcast %19 : vector<1x1x1x32xf32> to vector<1x1x8x32xf32>
    %c0_17 = arith.constant 0 : index
    %c0_18 = arith.constant 0 : index
    %c0_19 = arith.constant 0 : index
    %c0_20 = arith.constant 0 : index
    %21 = vector.load %arg7[%c0_17, %c0_18, %c0_19, %c0_20] : memref<1x1x8x32xf32, #tpu.memory_space<vmem>>, vector<1x1x8x32xf32>
    tpu.vector_store %arg7[%c0_17, %c0_18, %c0_19, %c0_20], %20 {strides = array<i32>} : memref<1x1x8x32xf32, #tpu.memory_space<vmem>>, vector<1x1x8x32xf32>,
    return
  }
  func.func @transform_0(%arg0: i32, %arg1: i32) -> (i32, i32, i32, i32) {
    %c0_i32 = arith.constant 0 : i32
    %c0_i32_0 = arith.constant 0 : i32
    %c0_i32_1 = arith.constant 0 : i32
    return %arg0, %arg1, %c0_i32, %c0_i32_0 : i32, i32, i32, i32
  }
  func.func @transform_1(%arg0: i32, %arg1: i32) -> (i32, i32) {
    %c0_i32 = arith.constant 0 : i32
    %c0_i32_0 = arith.constant 0 : i32
    %c0_i32_1 = arith.constant 0 : i32
    return %c0_i32, %c0_i32_0 : i32, i32
  }
  func.func @transform_2(%arg0: i32, %arg1: i32) -> (i32, i32) {
    %c0_i32 = arith.constant 0 : i32
    %c0_i32_0 = arith.constant 0 : i32
    %c0_i32_1 = arith.constant 0 : i32
    return %c0_i32, %c0_i32_0 : i32, i32
  }
  func.func @transform_3(%arg0: i32, %arg1: i32) -> (i32, i32, i32, i32) {
    %c0_i32 = arith.constant 0 : i32
    %c0_i32_0 = arith.constant 0 : i32
    %c0_i32_1 = arith.constant 0 : i32
    return %arg0, %arg1, %c0_i32, %c0_i32_0 : i32, i32, i32, i32
  }
  func.func @transform_4(%arg0: i32, %arg1: i32) -> (i32, i32, i32, i32) {
    %c0_i32 = arith.constant 0 : i32
    %c0_i32_0 = arith.constant 0 : i32
    %c0_i32_1 = arith.constant 0 : i32
    return %arg0, %arg1, %c0_i32, %c0_i32_0 : i32, i32, i32, i32
  }
  func.func @transform_5(%arg0: i32, %arg1: i32) -> (i32, i32, i32, i32) {
    %c0_i32 = arith.constant 0 : i32
    %c0_i32_0 = arith.constant 0 : i32
    %c0_i32_1 = arith.constant 0 : i32
    return %arg0, %arg1, %c0_i32, %c0_i32_0 : i32, i32, i32, i32
  }
}

module attributes {stable_mosaic.version = 11 : i64} {
  func.func @_affine_silu_kernel(%arg0: i32, %arg1: i32, %arg2: memref<1x16x16x32xf32, #tpu.memory_space<vmem>>, %arg3: memref<1x1x32xf32, #tpu.memory_space<vmem>>, %arg4: memref<1x1x32xf32, #tpu.memory_space<vmem>>, %arg5: memref<1x16x16x32xf32, #tpu.memory_space<vmem>>) attributes {dimension_semantics = [#tpu.dimension_semantics<parallel>, #tpu.dimension_semantics<parallel>], iteration_bounds = array<i64: 2, 1>, scalar_prefetch = 0 : i64, scratch_operands = 0 : i64, tpu.core_type = #tpu.core_type<tc>, window_params = [{transform_indices = @transform_0, window_bounds = array<i64: 1, 16, 16, 32>}, {transform_indices = @transform_1, window_bounds = array<i64: 1, 1, 32>}, {transform_indices = @transform_2, window_bounds = array<i64: 1, 1, 32>}, {transform_indices = @transform_3, window_bounds = array<i64: 1, 16, 16, 32>}]} {
    %c0 = arith.constant 0 : index
    %c0_0 = arith.constant 0 : index
    %c0_1 = arith.constant 0 : index
    %c0_2 = arith.constant 0 : index
    %0 = vector.load %arg2[%c0, %c0_0, %c0_1, %c0_2] : memref<1x16x16x32xf32, #tpu.memory_space<vmem>>, vector<1x16x16x32xf32>
    %c0_3 = arith.constant 0 : index
    %c0_4 = arith.constant 0 : index
    %c0_5 = arith.constant 0 : index
    %1 = vector.load %arg3[%c0_3, %c0_4, %c0_5] : memref<1x1x32xf32, #tpu.memory_space<vmem>>, vector<1x1x32xf32>
    %2 = vector.shape_cast %1 : vector<1x1x32xf32> to vector<1x1x1x32xf32>
    %3 = vector.broadcast %2 : vector<1x1x1x32xf32> to vector<1x16x16x32xf32>
    %4 = arith.mulf %0, %3 : vector<1x16x16x32xf32>
    %c0_6 = arith.constant 0 : index
    %c0_7 = arith.constant 0 : index
    %c0_8 = arith.constant 0 : index
    %5 = vector.load %arg4[%c0_6, %c0_7, %c0_8] : memref<1x1x32xf32, #tpu.memory_space<vmem>>, vector<1x1x32xf32>
    %6 = vector.shape_cast %5 : vector<1x1x32xf32> to vector<1x1x1x32xf32>
    %7 = vector.broadcast %6 : vector<1x1x1x32xf32> to vector<1x16x16x32xf32>
    %8 = arith.addf %4, %7 : vector<1x16x16x32xf32>
    %9 = arith.negf %8 : vector<1x16x16x32xf32>
    %10 = math.exp %9 : vector<1x16x16x32xf32>
    %cst = arith.constant 1.000000e+00 : f32
    %11 = vector.broadcast %cst : f32 to vector<1x16x16x32xf32>
    %12 = arith.addf %11, %10 : vector<1x16x16x32xf32>
    %13 = arith.divf %11, %12 : vector<1x16x16x32xf32>
    %14 = arith.mulf %8, %13 : vector<1x16x16x32xf32>
    %c0_9 = arith.constant 0 : index
    %c0_10 = arith.constant 0 : index
    %c0_11 = arith.constant 0 : index
    %c0_12 = arith.constant 0 : index
    %15 = vector.load %arg5[%c0_9, %c0_10, %c0_11, %c0_12] : memref<1x16x16x32xf32, #tpu.memory_space<vmem>>, vector<1x16x16x32xf32>
    tpu.vector_store %arg5[%c0_9, %c0_10, %c0_11, %c0_12], %14 {strides = array<i32>} : memref<1x16x16x32xf32, #tpu.memory_space<vmem>>, vector<1x16x16x32xf32>,
    return
  }
  func.func @transform_0(%arg0: i32, %arg1: i32) -> (i32, i32, i32, i32) {
    %c0_i32 = arith.constant 0 : i32
    %c0_i32_0 = arith.constant 0 : i32
    %c0_i32_1 = arith.constant 0 : i32
    return %arg0, %arg1, %c0_i32, %c0_i32_0 : i32, i32, i32, i32
  }
  func.func @transform_1(%arg0: i32, %arg1: i32) -> (i32, i32, i32) {
    %c0_i32 = arith.constant 0 : i32
    %c0_i32_0 = arith.constant 0 : i32
    %c0_i32_1 = arith.constant 0 : i32
    return %arg0, %c0_i32, %c0_i32_0 : i32, i32, i32
  }
  func.func @transform_2(%arg0: i32, %arg1: i32) -> (i32, i32, i32) {
    %c0_i32 = arith.constant 0 : i32
    %c0_i32_0 = arith.constant 0 : i32
    %c0_i32_1 = arith.constant 0 : i32
    return %arg0, %c0_i32, %c0_i32_0 : i32, i32, i32
  }
  func.func @transform_3(%arg0: i32, %arg1: i32) -> (i32, i32, i32, i32) {
    %c0_i32 = arith.constant 0 : i32
    %c0_i32_0 = arith.constant 0 : i32
    %c0_i32_1 = arith.constant 0 : i32
    return %arg0, %arg1, %c0_i32, %c0_i32_0 : i32, i32, i32, i32
  }
}

</mosaic_0001>

<llo_original>
// kernel: block_forward.2
$region0: #{block_forward.2}
  #allocation0 [shape = 'u32[]', space=smem, size = 0x4, offset = 0x4, fixed_abs, tag = 'smem constant byte address 0x4 - core index']
  #allocation1 [shape = 'u32[72,128]{1,0:T(1,128)}', space=vmem, size = 0x9000, scoped, tag = 'internal scratch']
  %s0 = inlined_call_operand.vmem [shape: f32[2,16,16,36], index: 0, kind: input, shape index: {}]
  %s1 = inlined_call_operand.vmem [shape: f32[36,32], index: 1, kind: input, shape index: {}]
  %s2 = inlined_call_operand.vmem [shape: f32[1,32], index: 2, kind: input, shape index: {}]
  %s3 = inlined_call_operand.vmem [shape: f32[2,16,16,32], index: 3, kind: output, shape index: {0}]
  %s4 = inlined_call_operand.vmem [shape: f32[2,1,8,32], index: 4, kind: output, shape index: {1}]
  %s5 = inlined_call_operand.vmem [shape: f32[2,1,8,32], index: 5, kind: output, shape index: {2}]
  %6 = xla_tuple %s3, %s4, %s5
  %s7 = sld [smem:[#allocation0]]
  $region61: #{block_forward.2} parent=0
    _
  %s9 = ssub.s32 1, %s7
  %s10 = scalar_select 0, %s9, %s7
  loop: start=0, step=1, limit=4
  $region2: #{block_forward.2} parent=0 // loop_pre_header
    _
  $region3: #{block_forward.2} parent=0 // loop_header
    %s12 = sphi 0, %s16
    %p13 = scmp.ge.s32.totalorder %s12, 4
    %s19 = sphi 0, %s31
    %s20 = sphi 0, %s27
    %s21 = sphi 0, %s19
    %s22 = sphi 0, %s20
    %s23 = sphi 0, %s21
    %s24 = sphi 0, %s22
    %s36 = sphi 0, %s38
    %s39 = sphi 0, %s36
    %s40 = sphi 0, %s39
    %s56 = sphi 0, %s40
    %s60 = sphi 0, %s60
    %s62 = sphi 0, %s60
    %s63 = sphi 0, %s62
    %s77 = sphi 0, %s63
    %s81 = sphi 0, %s81
    %s83 = sphi 0, %s81
    %s84 = sphi 0, %s83
    %s98 = sphi 0, %s84
    %s106 = sphi 0, %s108
    %s109 = sphi 0, %s106
    %s110 = sphi 0, %s109
    %s126 = sphi 0, %s110
    %s134 = sphi 0, %s136
    %s137 = sphi 0, %s134
    %s138 = sphi 0, %s137
    %s154 = sphi 0, %s138
    %s162 = sphi 0, %s164
    %s165 = sphi 0, %s162
    %s166 = sphi 0, %s165
    %s182 = sphi 0, %s166
  $region4: #{block_forward.2} parent=0 // loop_header_branch
    %15 = sbr.rel (%p13) target = $region8
  $region5: #{block_forward.2} parent=0 // loop_body
    %s17 = ssub.s32 %s12, 1
    %s18 = ssub.s32 %s12, 2
    %s25 = sadd.s32 1, %s20
    %p26 = scmp.ge.s32.totalorder %s25, 1
    %s27 = scalar_select %p26, 0, %s25
    %s28 = sadd.s32 1, %s19
    %s29 = scalar_select %p26, %s28, %s19
    %p30 = scmp.ge.s32.totalorder %s29, 2
    %s31 = scalar_select %p30, 0, %s29
    %s32 = ssub.s32 %s19, %s31
    %s33 = ssub.s32 %s20, %s27
    %s34 = sor.u32 %s32, %s33
    %p35 = scmp.eq.s32.totalorder %s34, 0
    %s37 = sadd.s32 %s36, 1
    %s38 = scalar_select %p35, %s36, %s37
    %p41 = pneg %p35
    %p42 = scmp.eq.s32.totalorder %s12, 1
    %p43 = por %p41, %p42
    %p44 = scmp.ne.s32.totalorder %s36, %s39
    %p45 = scmp.eq.s32.totalorder %s12, 0
    %p46 = por %p44, %p45
    %p47 = scmp.ne.s32.totalorder %s36, %s39
    %p48 = scmp.eq.s32.totalorder %s17, 1
    %p49 = por %p47, %p48
    %p50 = scmp.ne.s32.totalorder %s39, %s40
    %p51 = scmp.eq.s32.totalorder %s17, 0
    %p52 = por %p50, %p51
    %p53 = scmp.ne.s32.totalorder %s39, %s40
    %p54 = scmp.eq.s32.totalorder %s18, 1
    %p55 = por %p53, %p54
    %p57 = scmp.ne.s32.totalorder %s40, %s56
    %p58 = scmp.eq.s32.totalorder %s18, 0
    %p59 = por %p57, %p58
    %s61 = sadd.s32 %s60, 1
    %p64 = scmp.eq.s32.totalorder %s12, 1
    %p65 = scmp.ne.s32.totalorder %s60, %s62
    %p66 = scmp.eq.s32.totalorder %s12, 0
    %p67 = por %p65, %p66
    %p68 = scmp.ne.s32.totalorder %s60, %s62
    %p69 = scmp.eq.s32.totalorder %s17, 1
    %p70 = por %p68, %p69
    %p71 = scmp.ne.s32.totalorder %s62, %s63
    %p72 = scmp.eq.s32.totalorder %s17, 0
    %p73 = por %p71, %p72
    %p74 = scmp.ne.s32.totalorder %s62, %s63
    %p75 = scmp.eq.s32.totalorder %s18, 1
    %p76 = por %p74, %p75
    %p78 = scmp.ne.s32.totalorder %s63, %s77
    %p79 = scmp.eq.s32.totalorder %s18, 0
    %p80 = por %p78, %p79
    %s82 = sadd.s32 %s81, 1
    %p85 = scmp.eq.s32.totalorder %s12, 1
    %p86 = scmp.ne.s32.totalorder %s81, %s83
    %p87 = scmp.eq.s32.totalorder %s12, 0
    %p88 = por %p86, %p87
    %p89 = scmp.ne.s32.totalorder %s81, %s83
    %p90 = scmp.eq.s32.totalorder %s17, 1
    %p91 = por %p89, %p90
    %p92 = scmp.ne.s32.totalorder %s83, %s84
    %p93 = scmp.eq.s32.totalorder %s17, 0
    %p94 = por %p92, %p93
    %p95 = scmp.ne.s32.totalorder %s83, %s84
    %p96 = scmp.eq.s32.totalorder %s18, 1
    %p97 = por %p95, %p96
    %p99 = scmp.ne.s32.totalorder %s84, %s98
    %p100 = scmp.eq.s32.totalorder %s18, 0
    %p101 = por %p99, %p100
    %s102 = ssub.s32 %s19, %s31
    %s103 = ssub.s32 %s20, %s27
    %s104 = sor.u32 %s102, %s103
    %p105 = scmp.eq.s32.totalorder %s104, 0
    %s107 = sadd.s32 %s106, 1
    %s108 = scalar_select %p105, %s106, %s107
    %p111 = pneg %p105
    %p112 = scmp.eq.s32.totalorder %s12, 1
    %p113 = por %p111, %p112
    %p114 = scmp.ne.s32.totalorder %s106, %s109
    %p115 = scmp.eq.s32.totalorder %s12, 0
    %p116 = por %p114, %p115
    %p117 = scmp.ne.s32.totalorder %s106, %s109
    %p118 = scmp.eq.s32.totalorder %s17, 1
    %p119 = por %p117, %p118
    %p120 = scmp.ne.s32.totalorder %s109, %s110
    %p121 = scmp.eq.s32.totalorder %s17, 0
    %p122 = por %p120, %p121
    %p123 = scmp.ne.s32.totalorder %s109, %s110
    %p124 = scmp.eq.s32.totalorder %s18, 1
    %p125 = por %p123, %p124
    %p127 = scmp.ne.s32.totalorder %s110, %s126
    %p128 = scmp.eq.s32.totalorder %s18, 0
    %p129 = por %p127, %p128
    %s130 = ssub.s32 %s19, %s31
    %s131 = ssub.s32 %s20, %s27
    %s132 = sor.u32 %s130, %s131
    %p133 = scmp.eq.s32.totalorder %s132, 0
    %s135 = sadd.s32 %s134, 1
    %s136 = scalar_select %p133, %s134, %s135
    %p139 = pneg %p133
    %p140 = scmp.eq.s32.totalorder %s12, 1
    %p141 = por %p139, %p140
    %p142 = scmp.ne.s32.totalorder %s134, %s137
    %p143 = scmp.eq.s32.totalorder %s12, 0
    %p144 = por %p142, %p143
    %p145 = scmp.ne.s32.totalorder %s134, %s137
    %p146 = scmp.eq.s32.totalorder %s17, 1
    %p147 = por %p145, %p146
    %p148 = scmp.ne.s32.totalorder %s137, %s138
    %p149 = scmp.eq.s32.totalorder %s17, 0
    %p150 = por %p148, %p149
    %p151 = scmp.ne.s32.totalorder %s137, %s138
    %p152 = scmp.eq.s32.totalorder %s18, 1
    %p153 = por %p151, %p152
    %p155 = scmp.ne.s32.totalorder %s138, %s154
    %p156 = scmp.eq.s32.totalorder %s18, 0
    %p157 = por %p155, %p156
    %s158 = ssub.s32 %s19, %s31
    %s159 = ssub.s32 %s20, %s27
    %s160 = sor.u32 %s158, %s159
    %p161 = scmp.eq.s32.totalorder %s160, 0
    %s163 = sadd.s32 %s162, 1
    %s164 = scalar_select %p161, %s162, %s163
    %p167 = pneg %p161
    %p168 = scmp.eq.s32.totalorder %s12, 1
    %p169 = por %p167, %p168
    %p170 = scmp.ne.s32.totalorder %s162, %s165
    %p171 = scmp.eq.s32.totalorder %s12, 0
    %p172 = por %p170, %p171
    %p173 = scmp.ne.s32.totalorder %s162, %s165
    %p174 = scmp.eq.s32.totalorder %s17, 1
    %p175 = por %p173, %p174
    %p176 = scmp.ne.s32.totalorder %s165, %s166
    %p177 = scmp.eq.s32.totalorder %s17, 0
    %p178 = por %p176, %p177
    %p179 = scmp.ne.s32.totalorder %s165, %s166
    %p180 = scmp.eq.s32.totalorder %s18, 1
    %p181 = por %p179, %p180
    %p183 = scmp.ne.s32.totalorder %s166, %s182
    %p184 = scmp.eq.s32.totalorder %s18, 0
    %p185 = por %p183, %p184
    %p186 = scmp.le.s32.totalorder 1, %s12
    %p187 = scmp.lt.s32.totalorder %s12, 3
    %p188 = pnand %p186, %p187
    %p189 = pneg %p188
    // Predicated region
    $region9: #{block_forward.2} parent=5 // pred_check
      _
    $region10: #{block_forward.2} parent=5 // pred_check_branch
      %191 = sbr.rel (%p188) target = $region12
    $region11: #{block_forward.2} parent=5 // pred_region
      %s192 = ssub.s32 %s12, 1
      // Predicated region
      $region13: #{block_forward.2} parent=11 // pred_check
        %p193 = pneg %p73
      $region14: #{block_forward.2} parent=11 // pred_check_branch
        %195 = sbr.rel (%p193) target = $region16
      $region15: #{block_forward.2} parent=11 // pred_region
        _
      $region16: #{block_forward.2} parent=11 // pred_fallthru
        _
      // Predicated region
      $region17: #{block_forward.2} parent=11 // pred_check
        %p196 = pneg %p94
      $region18: #{block_forward.2} parent=11 // pred_check_branch
        %198 = sbr.rel (%p196) target = $region20
      $region19: #{block_forward.2} parent=11 // pred_region
        _
      $region20: #{block_forward.2} parent=11 // pred_fallthru
        _
    $region12: #{block_forward.2} parent=5 // pred_fallthru
      _
    %p199 = scmp.lt.s32.totalorder %s12, 2
    // Predicated region
    $region21: #{block_forward.2} parent=5 // pred_check
      %p200 = pneg %p199
    $region22: #{block_forward.2} parent=5 // pred_check_branch
      %202 = sbr.rel (%p200) target = $region24
    $region23: #{block_forward.2} parent=5 // pred_region
      // Predicated region
      $region25: #{block_forward.2} parent=23 // pred_check
        %p203 = pneg %p46
      $region26: #{block_forward.2} parent=23 // pred_check_branch
        %205 = sbr.rel (%p203) target = $region28
      $region27: #{block_forward.2} parent=23 // pred_region
        %s206 = smul.u32 16, %s20
        %p207 = scmp.lt.s32.totalorder %s19, 1
        %s208 = scalar_select %p207, %s19, 1
        %p209 = scmp.lt.s32.totalorder %s206, 15
        %s210 = scalar_select %p209, %s206, 15
        %s211 = smul.addr %s210, 2
        %s212 = smul.addr %s208, 32
        %s213 = sadd.s32 %s211, %s212
        %s214 = smul.addr %s213, 8
        %s215 = scalar_lea.vmem %s0, %s214
        %s216 = smul.u32 16, %s20
      $region28: #{block_forward.2} parent=23 // pred_fallthru
        _
    $region24: #{block_forward.2} parent=5 // pred_fallthru
      _
    %p217 = scmp.le.s32.totalorder 1, %s12
    %p218 = scmp.lt.s32.totalorder %s12, 3
    %p219 = pnand %p217, %p218
    %p220 = pneg %p219
    // Predicated region
    $region29: #{block_forward.2} parent=5 // pred_check
      _
    $region30: #{block_forward.2} parent=5 // pred_check_branch
      %222 = sbr.rel (%p219) target = $region32
    $region31: #{block_forward.2} parent=5 // pred_region
      %s223 = ssub.s32 %s12, 1
      %s224 = smul.u32 16, %s22
      %p225 = scmp.lt.s32.totalorder %s21, 1
      %s226 = scalar_select %p225, %s21, 1
      %p227 = scmp.lt.s32.totalorder %s224, 15
      %s228 = scalar_select %p227, %s224, 15
      %s229 = smul.addr %s228, 2
      %s230 = smul.addr %s226, 32
      %s231 = sadd.s32 %s229, %s230
      %s232 = smul.addr %s231, 8
      %s233 = scalar_lea.vmem %s0, %s232
      %p234 = pneg %p52
      %p235 = pneg %p49
      %p236 = pneg %p73
      %p237 = pneg %p70
      %p238 = pneg %p94
      %p239 = pneg %p91
      %p240 = pneg %p122
      %p241 = pneg %p119
      %s242 = smul.u32 16, %s22
      %p243 = scmp.lt.s32.totalorder %s21, 1
      %s244 = scalar_select %p243, %s21, 1
      %p245 = scmp.lt.s32.totalorder %s242, 15
      %s246 = scalar_select %p245, %s242, 15
      %s247 = smul.addr %s246, 2
      %s248 = smul.addr %s244, 32
      %s249 = sadd.s32 %s247, %s248
      %s250 = smul.addr %s249, 8
      %s251 = scalar_lea.vmem %s3, %s250
      %p252 = pneg %p150
      %p253 = pneg %p147
      %p254 = scmp.lt.s32.totalorder %s21, 1
      %s255 = scalar_select %p254, %s21, 1
      %p256 = scmp.lt.s32.totalorder %s22, 0
      %s257 = scalar_select %p256, %s22, 0
      %s258 = sadd.s32 %s257, %s255
      %s259 = smul.addr %s258, 8
      %s260 = scalar_lea.vmem %s4, %s259
      %p261 = pneg %p178
      %p262 = pneg %p175
      %p263 = scmp.lt.s32.totalorder %s21, 1
      %s264 = scalar_select %p263, %s21, 1
      %p265 = scmp.lt.s32.totalorder %s22, 0
      %s266 = scalar_select %p265, %s22, 0
      %s267 = sadd.s32 %s266, %s264
      %s268 = smul.addr %s267, 8
      %s269 = scalar_lea.vmem %s5, %s268
      %s270 = smul.u32 16, %s22
      %p271 = scmp.lt.s32.totalorder %s21, 1
      %s272 = scalar_select %p271, %s21, 1
      %p273 = scmp.lt.s32.totalorder %s270, 15
      %s274 = scalar_select %p273, %s270, 15
      %s275 = smul.addr %s274, 2
      %s276 = smul.addr %s272, 32
      %s277 = sadd.s32 %s275, %s276
      %s278 = smul.addr %s277, 8
      %s279 = scalar_lea.vmem %s0, %s278
      %s280 = smul.u32 16, %s22
      %s281 = smul.u32 16, %s22
      %p282 = scmp.lt.s32.totalorder %s21, 1
      %s283 = scalar_select %p282, %s21, 1
      %p284 = scmp.lt.s32.totalorder %s281, 15
      %s285 = scalar_select %p284, %s281, 15
      %s286 = smul.addr %s285, 2
      %s287 = smul.addr %s283, 32
      %s288 = sadd.s32 %s286, %s287
      %s289 = smul.addr %s288, 8
      %s290 = scalar_lea.vmem %s3, %s289
      %s291 = smul.u32 16, %s22
      %p292 = scmp.lt.s32.totalorder %s21, 1
      %s293 = scalar_select %p292, %s21, 1
      %p294 = scmp.lt.s32.totalorder %s22, 0
      %s295 = scalar_select %p294, %s22, 0
      %s296 = sadd.s32 %s295, %s293
      %s297 = smul.addr %s296, 8
      %s298 = scalar_lea.vmem %s4, %s297
      %p299 = scmp.lt.s32.totalorder %s21, 1
      %s300 = scalar_select %p299, %s21, 1
      %p301 = scmp.lt.s32.totalorder %s22, 0
      %s302 = scalar_select %p301, %s22, 0
      %s303 = sadd.s32 %s302, %s300
      %s304 = smul.addr %s303, 8
      %s305 = scalar_lea.vmem %s5, %s304
      %v306 = vld [vmem:[%s279] sm:$0xff]
      %v307 = vld [vmem:[%s279 + $0x8] sm:$0xff]
      %v308 = vld [vmem:[%s279 + $0x10] sm:$0xff]
      %v309 = vld [vmem:[%s279 + $0x18] sm:$0xff]
      %v310 = vld [vmem:[%s279 + $0x20] sm:$0xff]
      %v311 = vld [vmem:[%s279 + $0x28] sm:$0xff]
      %v312 = vld [vmem:[%s279 + $0x30] sm:$0xff]
      %v313 = vld [vmem:[%s279 + $0x38] sm:$0xff]
      %v314 = vld [vmem:[%s279 + $0x40] sm:$0xff]
      %v315 = vld [vmem:[%s279 + $0x48] sm:$0xff]
      %v316 = vld [vmem:[%s279 + $0x50] sm:$0xff]
      %v317 = vld [vmem:[%s279 + $0x58] sm:$0xff]
      %v318 = vld [vmem:[%s279 + $0x60] sm:$0xff]
      %v319 = vld [vmem:[%s279 + $0x68] sm:$0xff]
      %v320 = vld [vmem:[%s279 + $0x70] sm:$0xff]
      %v321 = vld [vmem:[%s279 + $0x78] sm:$0xff]
      %v322 = vld [vmem:[%s279 + $0x80] sm:$0xff]
      %v323 = vld [vmem:[%s279 + $0x88] sm:$0xff]
      %v324 = vld [vmem:[%s279 + $0x90] sm:$0xff]
      %v325 = vld [vmem:[%s279 + $0x98] sm:$0xff]
      %v326 = vld [vmem:[%s279 + $0xa0] sm:$0xff]
      %v327 = vld [vmem:[%s279 + $0xa8] sm:$0xff]
      %v328 = vld [vmem:[%s279 + $0xb0] sm:$0xff]
      %v329 = vld [vmem:[%s279 + $0xb8] sm:$0xff]
      %v330 = vld [vmem:[%s279 + $0xc0] sm:$0xff]
      %v331 = vld [vmem:[%s279 + $0xc8] sm:$0xff]
      %v332 = vld [vmem:[%s279 + $0xd0] sm:$0xff]
      %v333 = vld [vmem:[%s279 + $0xd8] sm:$0xff]
      %v334 = vld [vmem:[%s279 + $0xe0] sm:$0xff]
      %v335 = vld [vmem:[%s279 + $0xe8] sm:$0xff]
      %v336 = vld [vmem:[%s279 + $0xf0] sm:$0xff]
      %v337 = vld [vmem:[%s279 + $0xf8] sm:$0xff]
      %v338 = vld [vmem:[%s1] sm:$0xff]
      %v339 = vld [vmem:[%s1 + $0x8] sm:$0xff]
      %v340 = vld [vmem:[%s1 + $0x10] sm:$0xff]
      %v341 = vld [vmem:[%s1 + $0x18] sm:$0xff]
      %v342 = vld [vmem:[%s1 + $0x20] sm:$0xf]
      %v343 = vld [vmem:[%s2] sm:$0x1]
      %v345 = vperm.slane %v343, 0
      %vm347 = vcmask 293888
      %v349 = vsel %vm347, %v306, 0
      %v352 = vsel %vm347, %v307, 0
      %v355 = vsel %vm347, %v308, 0
      %v358 = vsel %vm347, %v309, 0
      %v361 = vsel %vm347, %v310, 0
      %v364 = vsel %vm347, %v311, 0
      %v367 = vsel %vm347, %v312, 0
      %v370 = vsel %vm347, %v313, 0
      %v373 = vsel %vm347, %v314, 0
      %v376 = vsel %vm347, %v315, 0
      %v379 = vsel %vm347, %v316, 0
      %v382 = vsel %vm347, %v317, 0
      %v385 = vsel %vm347, %v318, 0
      %v388 = vsel %vm347, %v319, 0
      %v391 = vsel %vm347, %v320, 0
      %v394 = vsel %vm347, %v321, 0
      %v397 = vsel %vm347, %v322, 0
      %v400 = vsel %vm347, %v323, 0
      %v403 = vsel %vm347, %v324, 0
      %v406 = vsel %vm347, %v325, 0
      %v409 = vsel %vm347, %v326, 0
      %v412 = vsel %vm347, %v327, 0
      %v415 = vsel %vm347, %v328, 0
      %v418 = vsel %vm347, %v329, 0
      %v421 = vsel %vm347, %v330, 0
      %v424 = vsel %vm347, %v331, 0
      %v427 = vsel %vm347, %v332, 0
      %v430 = vsel %vm347, %v333, 0
      %v433 = vsel %vm347, %v334, 0
      %v436 = vsel %vm347, %v335, 0
      %v439 = vsel %vm347, %v336, 0
      %v442 = vsel %vm347, %v337, 0
      %vm444 = vcmask 1043456
      %v446 = vsel %vm444, %v342, 0
      %448 = vmatpush.msra.mxu0 0.0
      %449 = vmatpush.msra.mxu0 0.0
      %450 = vmatpush.msra.mxu0 0.0
      %451 = vmatpush.msra.mxu0 0.0
      %452 = vmatpush.msra.mxu0 0.0
      %453 = vmatpush.msra.mxu0 0.0
      %454 = vmatpush.msra.mxu0 0.0
      %455 = vmatpush.msra.mxu0 0.0
      %456 = vmatpush.msra.mxu0 0.0
      %457 = vmatpush.msra.mxu0 0.0
      %458 = vmatpush.msra.mxu0 0.0
      %459 = vmatpush.msra.mxu0 %v446
      %460 = vmatpush.msra.mxu0 %v341
      %461 = vmatpush.msra.mxu0 %v340
      %462 = vmatpush.msra.mxu0 %v339
      %463 = vmatpush.msra.mxu0 %v338
      %464 = vmatmul.f32.gmra.mxu0 %v349
      %v465 = vpop.f32.mrf.mxu0
      %v466 = vadd.f32 %v345, %v465
      %467 = vmatmul.f32.gmra.mxu0 %v352
      %v468 = vpop.f32.mrf.mxu0
      %v469 = vadd.f32 %v345, %v468
      %470 = vmatmul.f32.gmra.mxu0 %v355
      %v471 = vpop.f32.mrf.mxu0
      %v472 = vadd.f32 %v345, %v471
      %473 = vmatmul.f32.gmra.mxu0 %v358
      %v474 = vpop.f32.mrf.mxu0
      %v475 = vadd.f32 %v345, %v474
      %476 = vmatmul.f32.gmra.mxu0 %v361
      %v477 = vpop.f32.mrf.mxu0
      %v478 = vadd.f32 %v345, %v477
      %479 = vmatmul.f32.gmra.mxu0 %v364
      %v480 = vpop.f32.mrf.mxu0
      %v481 = vadd.f32 %v345, %v480
      %482 = vmatmul.f32.gmra.mxu0 %v367
      %v483 = vpop.f32.mrf.mxu0
      %v484 = vadd.f32 %v345, %v483
      %485 = vmatmul.f32.gmra.mxu0 %v370
      %v486 = vpop.f32.mrf.mxu0
      %v487 = vadd.f32 %v345, %v486
      %488 = vmatmul.f32.gmra.mxu0 %v373
      %v489 = vpop.f32.mrf.mxu0
      %v490 = vadd.f32 %v345, %v489
      %491 = vmatmul.f32.gmra.mxu0 %v376
      %v492 = vpop.f32.mrf.mxu0
      %v493 = vadd.f32 %v345, %v492
      %494 = vmatmul.f32.gmra.mxu0 %v379
      %v495 = vpop.f32.mrf.mxu0
      %v496 = vadd.f32 %v345, %v495
      %497 = vmatmul.f32.gmra.mxu0 %v382
      %v498 = vpop.f32.mrf.mxu0
      %v499 = vadd.f32 %v345, %v498
      %500 = vmatmul.f32.gmra.mxu0 %v385
      %v501 = vpop.f32.mrf.mxu0
      %v502 = vadd.f32 %v345, %v501
      %503 = vmatmul.f32.gmra.mxu0 %v388
      %v504 = vpop.f32.mrf.mxu0
      %v505 = vadd.f32 %v345, %v504
      %506 = vmatmul.f32.gmra.mxu0 %v391
      %v507 = vpop.f32.mrf.mxu0
      %v508 = vadd.f32 %v345, %v507
      %509 = vmatmul.f32.gmra.mxu0 %v394
      %v510 = vpop.f32.mrf.mxu0
      %v511 = vadd.f32 %v345, %v510
      %512 = vmatmul.f32.gmra.mxu0 %v397
      %v513 = vpop.f32.mrf.mxu0
      %v514 = vadd.f32 %v345, %v513
      %515 = vmatmul.f32.gmra.mxu0 %v400
      %v516 = vpop.f32.mrf.mxu0
      %v517 = vadd.f32 %v345, %v516
      %518 = vmatmul.f32.gmra.mxu0 %v403
      %v519 = vpop.f32.mrf.mxu0
      %v520 = vadd.f32 %v345, %v519
      %521 = vmatmul.f32.gmra.mxu0 %v406
      %v522 = vpop.f32.mrf.mxu0
      %v523 = vadd.f32 %v345, %v522
      %524 = vmatmul.f32.gmra.mxu0 %v409
      %v525 = vpop.f32.mrf.mxu0
      %v526 = vadd.f32 %v345, %v525
      %527 = vmatmul.f32.gmra.mxu0 %v412
      %v528 = vpop.f32.mrf.mxu0
      %v529 = vadd.f32 %v345, %v528
      %530 = vmatmul.f32.gmra.mxu0 %v415
      %v531 = vpop.f32.mrf.mxu0
      %v532 = vadd.f32 %v345, %v531
      %533 = vmatmul.f32.gmra.mxu0 %v418
      %v534 = vpop.f32.mrf.mxu0
      %v535 = vadd.f32 %v345, %v534
      %536 = vmatmul.f32.gmra.mxu0 %v421
      %v537 = vpop.f32.mrf.mxu0
      %v538 = vadd.f32 %v345, %v537
      %539 = vmatmul.f32.gmra.mxu0 %v424
      %v540 = vpop.f32.mrf.mxu0
      %v541 = vadd.f32 %v345, %v540
      %542 = vmatmul.f32.gmra.mxu0 %v427
      %v543 = vpop.f32.mrf.mxu0
      %v544 = vadd.f32 %v345, %v543
      %545 = vmatmul.f32.gmra.mxu0 %v430
      %v546 = vpop.f32.mrf.mxu0
      %v547 = vadd.f32 %v345, %v546
      %548 = vmatmul.f32.gmra.mxu0 %v433
      %v549 = vpop.f32.mrf.mxu0
      %v550 = vadd.f32 %v345, %v549
      %551 = vmatmul.f32.gmra.mxu0 %v436
      %v552 = vpop.f32.mrf.mxu0
      %v553 = vadd.f32 %v345, %v552
      %554 = vmatmul.f32.gmra.mxu0 %v439
      %v555 = vpop.f32.mrf.mxu0
      %v556 = vadd.f32 %v345, %v555
      %557 = vmatmul.f32.gmra.mxu0 %v442
      %v558 = vpop.f32.mrf.mxu0
      %v559 = vadd.f32 %v345, %v558
      %560 = vdwg.mxu0
      %vm561 = vcmask 261120
      %562 = vst.msk [vmem:[%s290] sm:$0xff] %vm561, %v466
      %563 = vst.msk [vmem:[%s290 + $0x8] sm:$0xff] %vm561, %v469
      %564 = vst.msk [vmem:[%s290 + $0x10] sm:$0xff] %vm561, %v472
      %565 = vst.msk [vmem:[%s290 + $0x18] sm:$0xff] %vm561, %v475
      %566 = vst.msk [vmem:[%s290 + $0x20] sm:$0xff] %vm561, %v478
      %567 = vst.msk [vmem:[%s290 + $0x28] sm:$0xff] %vm561, %v481
      %568 = vst.msk [vmem:[%s290 + $0x30] sm:$0xff] %vm561, %v484
      %569 = vst.msk [vmem:[%s290 + $0x38] sm:$0xff] %vm561, %v487
      %570 = vst.msk [vmem:[%s290 + $0x40] sm:$0xff] %vm561, %v490
      %571 = vst.msk [vmem:[%s290 + $0x48] sm:$0xff] %vm561, %v493
      %572 = vst.msk [vmem:[%s290 + $0x50] sm:$0xff] %vm561, %v496
      %573 = vst.msk [vmem:[%s290 + $0x58] sm:$0xff] %vm561, %v499
      %574 = vst.msk [vmem:[%s290 + $0x60] sm:$0xff] %vm561, %v502
      %575 = vst.msk [vmem:[%s290 + $0x68] sm:$0xff] %vm561, %v505
      %576 = vst.msk [vmem:[%s290 + $0x70] sm:$0xff] %vm561, %v508
      %577 = vst.msk [vmem:[%s290 + $0x78] sm:$0xff] %vm561, %v511
      %578 = vst.msk [vmem:[%s290 + $0x80] sm:$0xff] %vm561, %v514
      %579 = vst.msk [vmem:[%s290 + $0x88] sm:$0xff] %vm561, %v517
      %580 = vst.msk [vmem:[%s290 + $0x90] sm:$0xff] %vm561, %v520
      %581 = vst.msk [vmem:[%s290 + $0x98] sm:$0xff] %vm561, %v523
      %582 = vst.msk [vmem:[%s290 + $0xa0] sm:$0xff] %vm561, %v526
      %583 = vst.msk [vmem:[%s290 + $0xa8] sm:$0xff] %vm561, %v529
      %584 = vst.msk [vmem:[%s290 + $0xb0] sm:$0xff] %vm561, %v532
      %585 = vst.msk [vmem:[%s290 + $0xb8] sm:$0xff] %vm561, %v535
      %586 = vst.msk [vmem:[%s290 + $0xc0] sm:$0xff] %vm561, %v538
      %587 = vst.msk [vmem:[%s290 + $0xc8] sm:$0xff] %vm561, %v541
      %588 = vst.msk [vmem:[%s290 + $0xd0] sm:$0xff] %vm561, %v544
      %589 = vst.msk [vmem:[%s290 + $0xd8] sm:$0xff] %vm561, %v547
      %590 = vst.msk [vmem:[%s290 + $0xe0] sm:$0xff] %vm561, %v550
      %591 = vst.msk [vmem:[%s290 + $0xe8] sm:$0xff] %vm561, %v553
      %592 = vst.msk [vmem:[%s290 + $0xf0] sm:$0xff] %vm561, %v556
      %593 = vst.msk [vmem:[%s290 + $0xf8] sm:$0xff] %vm561, %v559
      %v594 = vsel %vm561, %v466, 0.0
      %v595 = vsel %vm561, %v469, 0.0
      %v596 = vadd.f32 %v594, %v595
      %v597 = vsel %vm561, %v472, 0.0
      %v598 = vadd.f32 %v596, %v597
      %v599 = vsel %vm561, %v475, 0.0
      %v600 = vadd.f32 %v598, %v599
      %v601 = vsel %vm561, %v478, 0.0
      %v602 = vadd.f32 %v600, %v601
      %v603 = vsel %vm561, %v481, 0.0
      %v604 = vadd.f32 %v602, %v603
      %v605 = vsel %vm561, %v484, 0.0
      %v606 = vadd.f32 %v604, %v605
      %v607 = vsel %vm561, %v487, 0.0
      %v608 = vadd.f32 %v606, %v607
      %v609 = vsel %vm561, %v490, 0.0
      %v610 = vadd.f32 %v608, %v609
      %v611 = vsel %vm561, %v493, 0.0
      %v612 = vadd.f32 %v610, %v611
      %v613 = vsel %vm561, %v496, 0.0
      %v614 = vadd.f32 %v612, %v613
      %v615 = vsel %vm561, %v499, 0.0
      %v616 = vadd.f32 %v614, %v615
      %v617 = vsel %vm561, %v502, 0.0
      %v618 = vadd.f32 %v616, %v617
      %v619 = vsel %vm561, %v505, 0.0
      %v620 = vadd.f32 %v618, %v619
      %v621 = vsel %vm561, %v508, 0.0
      %v622 = vadd.f32 %v620, %v621
      %v623 = vsel %vm561, %v511, 0.0
      %v624 = vadd.f32 %v622, %v623
      %v625 = vsel %vm561, %v514, 0.0
      %v626 = vadd.f32 %v624, %v625
      %v627 = vsel %vm561, %v517, 0.0
      %v628 = vadd.f32 %v626, %v627
      %v629 = vsel %vm561, %v520, 0.0
      %v630 = vadd.f32 %v628, %v629
      %v631 = vsel %vm561, %v523, 0.0
      %v632 = vadd.f32 %v630, %v631
      %v633 = vsel %vm561, %v526, 0.0
      %v634 = vadd.f32 %v632, %v633
      %v635 = vsel %vm561, %v529, 0.0
      %v636 = vadd.f32 %v634, %v635
      %v637 = vsel %vm561, %v532, 0.0
      %v638 = vadd.f32 %v636, %v637
      %v639 = vsel %vm561, %v535, 0.0
      %v640 = vadd.f32 %v638, %v639
      %v641 = vsel %vm561, %v538, 0.0
      %v642 = vadd.f32 %v640, %v641
      %v643 = vsel %vm561, %v541, 0.0
      %v644 = vadd.f32 %v642, %v643
      %v645 = vsel %vm561, %v544, 0.0
      %v646 = vadd.f32 %v644, %v645
      %v647 = vsel %vm561, %v547, 0.0
      %v648 = vadd.f32 %v646, %v647
      %v649 = vsel %vm561, %v550, 0.0
      %v650 = vadd.f32 %v648, %v649
      %v651 = vsel %vm561, %v553, 0.0
      %v652 = vadd.f32 %v650, %v651
      %v653 = vsel %vm561, %v556, 0.0
      %v654 = vadd.f32 %v652, %v653
      %v655 = vsel %vm561, %v559, 0.0
      %v656 = vadd.f32 %v654, %v655
      %v657 = vrot.slane %v656, 4
      %v658 = vadd.f32 %v656, %v657
      %v659 = vrot.slane %v658, 2
      %v660 = vadd.f32 %v658, %v659
      %v661 = vrot.slane %v660, 1
      %v662 = vadd.f32 %v660, %v661
      %v663 = vmul.f32 %v466, %v466
      %v664 = vmul.f32 %v469, %v469
      %v665 = vmul.f32 %v472, %v472
      %v666 = vmul.f32 %v475, %v475
      %v667 = vmul.f32 %v478, %v478
      %v668 = vmul.f32 %v481, %v481
      %v669 = vmul.f32 %v484, %v484
      %v670 = vmul.f32 %v487, %v487
      %v671 = vmul.f32 %v490, %v490
      %v672 = vmul.f32 %v493, %v493
      %v673 = vmul.f32 %v496, %v496
      %v674 = vmul.f32 %v499, %v499
      %v675 = vmul.f32 %v502, %v502
      %v676 = vmul.f32 %v505, %v505
      %v677 = vmul.f32 %v508, %v508
      %v678 = vmul.f32 %v511, %v511
      %v679 = vmul.f32 %v514, %v514
      %v680 = vmul.f32 %v517, %v517
      %v681 = vmul.f32 %v520, %v520
      %v682 = vmul.f32 %v523, %v523
      %v683 = vmul.f32 %v526, %v526
      %v684 = vmul.f32 %v529, %v529
      %v685 = vmul.f32 %v532, %v532
      %v686 = vmul.f32 %v535, %v535
      %v687 = vmul.f32 %v538, %v538
      %v688 = vmul.f32 %v541, %v541
      %v689 = vmul.f32 %v544, %v544
      %v690 = vmul.f32 %v547, %v547
      %v691 = vmul.f32 %v550, %v550
      %v692 = vmul.f32 %v553, %v553
      %v693 = vmul.f32 %v556, %v556
      %v694 = vmul.f32 %v559, %v559
      %v695 = vsel %vm561, %v663, 0.0
      %v696 = vsel %vm561, %v664, 0.0
      %v697 = vadd.f32 %v695, %v696
      %v698 = vsel %vm561, %v665, 0.0
      %v699 = vadd.f32 %v697, %v698
      %v700 = vsel %vm561, %v666, 0.0
      %v701 = vadd.f32 %v699, %v700
      %v702 = vsel %vm561, %v667, 0.0
      %v703 = vadd.f32 %v701, %v702
      %v704 = vsel %vm561, %v668, 0.0
      %v705 = vadd.f32 %v703, %v704
      %v706 = vsel %vm561, %v669, 0.0
      %v707 = vadd.f32 %v705, %v706
      %v708 = vsel %vm561, %v670, 0.0
      %v709 = vadd.f32 %v707, %v708
      %v710 = vsel %vm561, %v671, 0.0
      %v711 = vadd.f32 %v709, %v710
      %v712 = vsel %vm561, %v672, 0.0
      %v713 = vadd.f32 %v711, %v712
      %v714 = vsel %vm561, %v673, 0.0
      %v715 = vadd.f32 %v713, %v714
      %v716 = vsel %vm561, %v674, 0.0
      %v717 = vadd.f32 %v715, %v716
      %v718 = vsel %vm561, %v675, 0.0
      %v719 = vadd.f32 %v717, %v718
      %v720 = vsel %vm561, %v676, 0.0
      %v721 = vadd.f32 %v719, %v720
      %v722 = vsel %vm561, %v677, 0.0
      %v723 = vadd.f32 %v721, %v722
      %v724 = vsel %vm561, %v678, 0.0
      %v725 = vadd.f32 %v723, %v724
      %v726 = vsel %vm561, %v679, 0.0
      %v727 = vadd.f32 %v725, %v726
      %v728 = vsel %vm561, %v680, 0.0
      %v729 = vadd.f32 %v727, %v728
      %v730 = vsel %vm561, %v681, 0.0
      %v731 = vadd.f32 %v729, %v730
      %v732 = vsel %vm561, %v682, 0.0
      %v733 = vadd.f32 %v731, %v732
      %v734 = vsel %vm561, %v683, 0.0
      %v735 = vadd.f32 %v733, %v734
      %v736 = vsel %vm561, %v684, 0.0
      %v737 = vadd.f32 %v735, %v736
      %v738 = vsel %vm561, %v685, 0.0
      %v739 = vadd.f32 %v737, %v738
      %v740 = vsel %vm561, %v686, 0.0
      %v741 = vadd.f32 %v739, %v740
      %v742 = vsel %vm561, %v687, 0.0
      %v743 = vadd.f32 %v741, %v742
      %v744 = vsel %vm561, %v688, 0.0
      %v745 = vadd.f32 %v743, %v744
      %v746 = vsel %vm561, %v689, 0.0
      %v747 = vadd.f32 %v745, %v746
      %v748 = vsel %vm561, %v690, 0.0
      %v749 = vadd.f32 %v747, %v748
      %v750 = vsel %vm561, %v691, 0.0
      %v751 = vadd.f32 %v749, %v750
      %v752 = vsel %vm561, %v692, 0.0
      %v753 = vadd.f32 %v751, %v752
      %v754 = vsel %vm561, %v693, 0.0
      %v755 = vadd.f32 %v753, %v754
      %v756 = vsel %vm561, %v694, 0.0
      %v757 = vadd.f32 %v755, %v756
      %v758 = vrot.slane %v757, 4
      %v759 = vadd.f32 %v757, %v758
      %v760 = vrot.slane %v759, 2
      %v761 = vadd.f32 %v759, %v760
      %v762 = vrot.slane %v761, 1
      %v763 = vadd.f32 %v761, %v762
      %764 = vst.msk [vmem:[%s298] sm:$0xff] %vm561, %v662
      %765 = vst.msk [vmem:[%s305] sm:$0xff] %vm561, %v763
      %s766 = smul.u32 16, %s22
      %p767 = scmp.lt.s32.totalorder %s21, 1
      %s768 = scalar_select %p767, %s21, 1
      %p769 = scmp.lt.s32.totalorder %s766, 15
      %s770 = scalar_select %p769, %s766, 15
      %s771 = smul.addr %s770, 2
      %s772 = smul.addr %s768, 32
      %s773 = sadd.s32 %s771, %s772
      %s774 = smul.addr %s773, 8
      %s775 = scalar_lea.vmem %s3, %s774
      %p776 = scmp.lt.s32.totalorder %s21, 1
      %s777 = scalar_select %p776, %s21, 1
      %p778 = scmp.lt.s32.totalorder %s22, 0
      %s779 = scalar_select %p778, %s22, 0
      %s780 = sadd.s32 %s779, %s777
      %s781 = smul.addr %s780, 8
      %s782 = scalar_lea.vmem %s4, %s781
      %p783 = scmp.lt.s32.totalorder %s21, 1
      %s784 = scalar_select %p783, %s21, 1
      %p785 = scmp.lt.s32.totalorder %s22, 0
      %s786 = scalar_select %p785, %s22, 0
      %s787 = sadd.s32 %s786, %s784
      %s788 = smul.addr %s787, 8
      %s789 = scalar_lea.vmem %s5, %s788
      // Predicated region
      $region33: #{block_forward.2} parent=31 // pred_check
        %p790 = pneg %p119
      $region34: #{block_forward.2} parent=31 // pred_check_branch
        %792 = sbr.rel (%p790) target = $region36
      $region35: #{block_forward.2} parent=31 // pred_region
        %s793 = smul.u32 16, %s22
      $region36: #{block_forward.2} parent=31 // pred_fallthru
        _
      // Predicated region
      $region37: #{block_forward.2} parent=31 // pred_check
        %p794 = pneg %p147
      $region38: #{block_forward.2} parent=31 // pred_check_branch
        %796 = sbr.rel (%p794) target = $region40
      $region39: #{block_forward.2} parent=31 // pred_region
        _
      $region40: #{block_forward.2} parent=31 // pred_fallthru
        _
      // Predicated region
      $region41: #{block_forward.2} parent=31 // pred_check
        %p797 = pneg %p175
      $region42: #{block_forward.2} parent=31 // pred_check_branch
        %799 = sbr.rel (%p797) target = $region44
      $region43: #{block_forward.2} parent=31 // pred_region
        _
      $region44: #{block_forward.2} parent=31 // pred_fallthru
        _
    $region32: #{block_forward.2} parent=5 // pred_fallthru
      _
    %p800 = scmp.le.s32.totalorder 2, %s12
    // Predicated region
    $region45: #{block_forward.2} parent=5 // pred_check
      %p801 = pneg %p800
    $region46: #{block_forward.2} parent=5 // pred_check_branch
      %803 = sbr.rel (%p801) target = $region48
    $region47: #{block_forward.2} parent=5 // pred_region
      %s804 = ssub.s32 %s12, 2
      // Predicated region
      $region49: #{block_forward.2} parent=47 // pred_check
        %p805 = pneg %p125
      $region50: #{block_forward.2} parent=47 // pred_check_branch
        %807 = sbr.rel (%p805) target = $region52
      $region51: #{block_forward.2} parent=47 // pred_region
        %s808 = smul.u32 16, %s24
        %p809 = scmp.lt.s32.totalorder %s23, 1
        %s810 = scalar_select %p809, %s23, 1
        %p811 = scmp.lt.s32.totalorder %s808, 15
        %s812 = scalar_select %p811, %s808, 15
        %s813 = smul.addr %s812, 2
        %s814 = smul.addr %s810, 32
        %s815 = sadd.s32 %s813, %s814
        %s816 = smul.addr %s815, 8
        %s817 = scalar_lea.vmem %s3, %s816
      $region52: #{block_forward.2} parent=47 // pred_fallthru
        _
      // Predicated region
      $region53: #{block_forward.2} parent=47 // pred_check
        %p818 = pneg %p153
      $region54: #{block_forward.2} parent=47 // pred_check_branch
        %820 = sbr.rel (%p818) target = $region56
      $region55: #{block_forward.2} parent=47 // pred_region
        %p821 = scmp.lt.s32.totalorder %s23, 1
        %s822 = scalar_select %p821, %s23, 1
        %p823 = scmp.lt.s32.totalorder %s24, 0
        %s824 = scalar_select %p823, %s24, 0
        %s825 = sadd.s32 %s824, %s822
        %s826 = smul.addr %s825, 8
        %s827 = scalar_lea.vmem %s4, %s826
      $region56: #{block_forward.2} parent=47 // pred_fallthru
        _
      // Predicated region
      $region57: #{block_forward.2} parent=47 // pred_check
        %p828 = pneg %p181
      $region58: #{block_forward.2} parent=47 // pred_check_branch
        %830 = sbr.rel (%p828) target = $region60
      $region59: #{block_forward.2} parent=47 // pred_region
        %p831 = scmp.lt.s32.totalorder %s23, 1
        %s832 = scalar_select %p831, %s23, 1
        %p833 = scmp.lt.s32.totalorder %s24, 0
        %s834 = scalar_select %p833, %s24, 0
        %s835 = sadd.s32 %s834, %s832
        %s836 = smul.addr %s835, 8
        %s837 = scalar_lea.vmem %s5, %s836
      $region60: #{block_forward.2} parent=47 // pred_fallthru
        _
    $region48: #{block_forward.2} parent=5 // pred_fallthru
      _
  $region6: #{block_forward.2} parent=0 // loop_footer
    %s16 = sadd.s32 1, %s12
  $region7: #{block_forward.2} parent=0 // loop_footer_branch
    %11 = sbr.rel target = $region3
  $region8: #{block_forward.2} parent=0 // loop_exit
    _

// kernel: block_forward.3
$region0: #{block_forward.3}
  #allocation0 [shape = 'u32[]', space=smem, size = 0x4, offset = 0x4, fixed_abs, tag = 'smem constant byte address 0x4 - core index']
  #allocation1 [shape = 'u32[72,128]{1,0:T(1,128)}', space=vmem, size = 0x9000, scoped, tag = 'internal scratch']
  %s0 = inlined_call_operand.vmem [shape: f32[2,16,16,32], index: 0, kind: input, shape index: {}]
  %s1 = inlined_call_operand.vmem [shape: f32[2,1,32], index: 1, kind: input, shape index: {}]
  %s2 = inlined_call_operand.vmem [shape: f32[2,1,32], index: 2, kind: input, shape index: {}]
  %s3 = inlined_call_operand.hbm [shape: f32[2,16,16,32], index: 3, kind: output, shape index: {}]
  %s4 = sld [smem:[#allocation0]]
  $region45: #{block_forward.3} parent=0
    _
  %s6 = ssub.s32 1, %s4
  %s7 = scalar_select 0, %s6, %s4
  $region1: #{block_forward.3} parent=0
    #allocation2 [shape = 'u8[262144]{0}', space=vmem, size = 0x40000, scoped, tag = 'output window, operand 0']
    #allocation3 [shape = 's32[2]{0}', space=sflag, size = 0x8, scoped, tag = 'scoped memory for block_forward.3']
    %8 = vsyncpa [#allocation3], 0
    %s9 = scalar_lea.sflag [#allocation3], 1
    %10 = vsyncpa %s9, 0
    loop: start=0, step=1, limit=4
    $region2: #{block_forward.3} parent=1 // loop_pre_header
      _
    $region3: #{block_forward.3} parent=1 // loop_header
      %s12 = sphi 0, %s16
      %p13 = scmp.ge.s32.totalorder %s12, 4
      %s19 = sphi 0, %s31
      %s20 = sphi 0, %s27
      %s21 = sphi 0, %s19
      %s22 = sphi 0, %s20
      %s23 = sphi 0, %s21
      %s24 = sphi 0, %s22
      %s36 = sphi 0, %s38
      %s39 = sphi 0, %s36
      %s40 = sphi 0, %s39
      %s56 = sphi 0, %s40
      %s62 = sphi 0, %s64
      %s65 = sphi 0, %s62
      %s66 = sphi 0, %s65
      %s82 = sphi 0, %s66
      %s88 = sphi 0, %s90
      %s91 = sphi 0, %s88
      %s92 = sphi 0, %s91
      %s108 = sphi 0, %s92
      %s116 = sphi 0, %s118
      %s119 = sphi 0, %s116
      %s120 = sphi 0, %s119
      %s136 = sphi 0, %s120
    $region4: #{block_forward.3} parent=1 // loop_header_branch
      %15 = sbr.rel (%p13) target = $region8
    $region5: #{block_forward.3} parent=1 // loop_body
      %s17 = ssub.s32 %s12, 1
      %s18 = ssub.s32 %s12, 2
      %s25 = sadd.s32 1, %s20
      %p26 = scmp.ge.s32.totalorder %s25, 1
      %s27 = scalar_select %p26, 0, %s25
      %s28 = sadd.s32 1, %s19
      %s29 = scalar_select %p26, %s28, %s19
      %p30 = scmp.ge.s32.totalorder %s29, 2
      %s31 = scalar_select %p30, 0, %s29
      %s32 = ssub.s32 %s19, %s31
      %s33 = ssub.s32 %s20, %s27
      %s34 = sor.u32 %s32, %s33
      %p35 = scmp.eq.s32.totalorder %s34, 0
      %s37 = sadd.s32 %s36, 1
      %s38 = scalar_select %p35, %s36, %s37
      %p41 = pneg %p35
      %p42 = scmp.eq.s32.totalorder %s12, 1
      %p43 = por %p41, %p42
      %p44 = scmp.ne.s32.totalorder %s36, %s39
      %p45 = scmp.eq.s32.totalorder %s12, 0
      %p46 = por %p44, %p45
      %p47 = scmp.ne.s32.totalorder %s36, %s39
      %p48 = scmp.eq.s32.totalorder %s17, 1
      %p49 = por %p47, %p48
      %p50 = scmp.ne.s32.totalorder %s39, %s40
      %p51 = scmp.eq.s32.totalorder %s17, 0
      %p52 = por %p50, %p51
      %p53 = scmp.ne.s32.totalorder %s39, %s40
      %p54 = scmp.eq.s32.totalorder %s18, 1
      %p55 = por %p53, %p54
      %p57 = scmp.ne.s32.totalorder %s40, %s56
      %p58 = scmp.eq.s32.totalorder %s18, 0
      %p59 = por %p57, %p58
      %s60 = ssub.s32 %s19, %s31
      %p61 = scmp.eq.s32.totalorder %s60, 0
      %s63 = sadd.s32 %s62, 1
      %s64 = scalar_select %p61, %s62, %s63
      %p67 = pneg %p61
      %p68 = scmp.eq.s32.totalorder %s12, 1
      %p69 = por %p67, %p68
      %p70 = scmp.ne.s32.totalorder %s62, %s65
      %p71 = scmp.eq.s32.totalorder %s12, 0
      %p72 = por %p70, %p71
      %p73 = scmp.ne.s32.totalorder %s62, %s65
      %p74 = scmp.eq.s32.totalorder %s17, 1
      %p75 = por %p73, %p74
      %p76 = scmp.ne.s32.totalorder %s65, %s66
      %p77 = scmp.eq.s32.totalorder %s17, 0
      %p78 = por %p76, %p77
      %p79 = scmp.ne.s32.totalorder %s65, %s66
      %p80 = scmp.eq.s32.totalorder %s18, 1
      %p81 = por %p79, %p80
      %p83 = scmp.ne.s32.totalorder %s66, %s82
      %p84 = scmp.eq.s32.totalorder %s18, 0
      %p85 = por %p83, %p84
      %s86 = ssub.s32 %s19, %s31
      %p87 = scmp.eq.s32.totalorder %s86, 0
      %s89 = sadd.s32 %s88, 1
      %s90 = scalar_select %p87, %s88, %s89
      %p93 = pneg %p87
      %p94 = scmp.eq.s32.totalorder %s12, 1
      %p95 = por %p93, %p94
      %p96 = scmp.ne.s32.totalorder %s88, %s91
      %p97 = scmp.eq.s32.totalorder %s12, 0
      %p98 = por %p96, %p97
      %p99 = scmp.ne.s32.totalorder %s88, %s91
      %p100 = scmp.eq.s32.totalorder %s17, 1
      %p101 = por %p99, %p100
      %p102 = scmp.ne.s32.totalorder %s91, %s92
      %p103 = scmp.eq.s32.totalorder %s17, 0
      %p104 = por %p102, %p103
      %p105 = scmp.ne.s32.totalorder %s91, %s92
      %p106 = scmp.eq.s32.totalorder %s18, 1
      %p107 = por %p105, %p106
      %p109 = scmp.ne.s32.totalorder %s92, %s108
      %p110 = scmp.eq.s32.totalorder %s18, 0
      %p111 = por %p109, %p110
      %s112 = ssub.s32 %s19, %s31
      %s113 = ssub.s32 %s20, %s27
      %s114 = sor.u32 %s112, %s113
      %p115 = scmp.eq.s32.totalorder %s114, 0
      %s117 = sadd.s32 %s116, 1
      %s118 = scalar_select %p115, %s116, %s117
      %p121 = pneg %p115
      %p122 = scmp.eq.s32.totalorder %s12, 1
      %p123 = por %p121, %p122
      %p124 = scmp.ne.s32.totalorder %s116, %s119
      %p125 = scmp.eq.s32.totalorder %s12, 0
      %p126 = por %p124, %p125
      %p127 = scmp.ne.s32.totalorder %s116, %s119
      %p128 = scmp.eq.s32.totalorder %s17, 1
      %p129 = por %p127, %p128
      %p130 = scmp.ne.s32.totalorder %s119, %s120
      %p131 = scmp.eq.s32.totalorder %s17, 0
      %p132 = por %p130, %p131
      %p133 = scmp.ne.s32.totalorder %s119, %s120
      %p134 = scmp.eq.s32.totalorder %s18, 1
      %p135 = por %p133, %p134
      %p137 = scmp.ne.s32.totalorder %s120, %s136
      %p138 = scmp.eq.s32.totalorder %s18, 0
      %p139 = por %p137, %p138
      %p140 = scmp.le.s32.totalorder 1, %s12
      %p141 = scmp.lt.s32.totalorder %s12, 3
      %p142 = pnand %p140, %p141
      %p143 = pneg %p142
      // Predicated region
      $region9: #{block_forward.3} parent=5 // pred_check
        _
      $region10: #{block_forward.3} parent=5 // pred_check_branch
        %145 = sbr.rel (%p142) target = $region12
      $region11: #{block_forward.3} parent=5 // pred_region
        %s146 = ssub.s32 %s12, 1
      $region12: #{block_forward.3} parent=5 // pred_fallthru
        _
      %p147 = scmp.lt.s32.totalorder %s12, 2
      // Predicated region
      $region13: #{block_forward.3} parent=5 // pred_check
        %p148 = pneg %p147
      $region14: #{block_forward.3} parent=5 // pred_check_branch
        %150 = sbr.rel (%p148) target = $region16
      $region15: #{block_forward.3} parent=5 // pred_region
        // Predicated region
        $region17: #{block_forward.3} parent=15 // pred_check
          %p151 = pneg %p46
        $region18: #{block_forward.3} parent=15 // pred_check_branch
          %153 = sbr.rel (%p151) target = $region20
        $region19: #{block_forward.3} parent=15 // pred_region
          %s154 = smul.u32 16, %s20
          %p155 = scmp.lt.s32.totalorder %s19, 1
          %s156 = scalar_select %p155, %s19, 1
          %p157 = scmp.lt.s32.totalorder %s154, 15
          %s158 = scalar_select %p157, %s154, 15
          %s159 = smul.addr %s158, 2
          %s160 = smul.addr %s156, 32
          %s161 = sadd.s32 %s159, %s160
          %s162 = smul.addr %s161, 8
          %s163 = scalar_lea.vmem %s0, %s162
          %s164 = smul.u32 16, %s20
        $region20: #{block_forward.3} parent=15 // pred_fallthru
          _
        // Predicated region
        $region21: #{block_forward.3} parent=15 // pred_check
          %p165 = pneg %p72
        $region22: #{block_forward.3} parent=15 // pred_check_branch
          %167 = sbr.rel (%p165) target = $region24
        $region23: #{block_forward.3} parent=15 // pred_region
          %p168 = scmp.lt.s32.totalorder %s19, 1
          %s169 = scalar_select %p168, %s19, 1
          %s170 = scalar_lea.vmem %s1, %s169
        $region24: #{block_forward.3} parent=15 // pred_fallthru
          _
        // Predicated region
        $region25: #{block_forward.3} parent=15 // pred_check
          %p171 = pneg %p98
        $region26: #{block_forward.3} parent=15 // pred_check_branch
          %173 = sbr.rel (%p171) target = $region28
        $region27: #{block_forward.3} parent=15 // pred_region
          %p174 = scmp.lt.s32.totalorder %s19, 1
          %s175 = scalar_select %p174, %s19, 1
          %s176 = scalar_lea.vmem %s2, %s175
        $region28: #{block_forward.3} parent=15 // pred_fallthru
          _
      $region16: #{block_forward.3} parent=5 // pred_fallthru
        _
      %p177 = scmp.le.s32.totalorder 1, %s12
      %p178 = scmp.lt.s32.totalorder %s12, 3
      %p179 = pnand %p177, %p178
      %p180 = pneg %p179
      // Predicated region
      $region29: #{block_forward.3} parent=5 // pred_check
        _
      $region30: #{block_forward.3} parent=5 // pred_check_branch
        %182 = sbr.rel (%p179) target = $region32
      $region31: #{block_forward.3} parent=5 // pred_region
        %s183 = ssub.s32 %s12, 1
        %s184 = smul.u32 16, %s22
        %p185 = scmp.lt.s32.totalorder %s21, 1
        %s186 = scalar_select %p185, %s21, 1
        %p187 = scmp.lt.s32.totalorder %s184, 15
        %s188 = scalar_select %p187, %s184, 15
        %s189 = smul.addr %s188, 2
        %s190 = smul.addr %s186, 32
        %s191 = sadd.s32 %s189, %s190
        %s192 = smul.addr %s191, 8
        %s193 = scalar_lea.vmem %s0, %s192
        %p194 = pneg %p52
        %p195 = pneg %p49
        %p196 = scmp.lt.s32.totalorder %s21, 1
        %s197 = scalar_select %p196, %s21, 1
        %s198 = scalar_lea.vmem %s1, %s197
        %p199 = pneg %p78
        %p200 = pneg %p75
        %p201 = scmp.lt.s32.totalorder %s21, 1
        %s202 = scalar_select %p201, %s21, 1
        %s203 = scalar_lea.vmem %s2, %s202
        %p204 = pneg %p104
        %p205 = pneg %p101
        %p206 = pneg %p132
        %p207 = pneg %p129
        %s208 = sand.u32 %s119, 1
        %s209 = scalar_lea.sflag [#allocation3], %s208
        %s210 = sand.u32 %s119, 1
        %s211 = smul.addr %s210, 256
        %s212 = scalar_lea.vmem [#allocation2], %s211
        %s213 = smul.u32 16, %s22
        %p214 = scmp.lt.s32.totalorder %s21, 1
        %s215 = scalar_select %p214, %s21, 1
        %p216 = scmp.lt.s32.totalorder %s213, 15
        %s217 = scalar_select %p216, %s213, 15
        %s218 = smul.addr %s217, 2
        %s219 = smul.addr %s215, 32
        %s220 = sadd.s32 %s218, %s219
        %s221 = smul.addr %s220, 8
        %s222 = scalar_lea.vmem %s0, %s221
        %s223 = smul.u32 16, %s22
        %p224 = scmp.lt.s32.totalorder %s21, 1
        %s225 = scalar_select %p224, %s21, 1
        %s226 = scalar_lea.vmem %s1, %s225
        %p227 = scmp.lt.s32.totalorder %s21, 1
        %s228 = scalar_select %p227, %s21, 1
        %s229 = scalar_lea.vmem %s2, %s228
        %s230 = smul.u32 16, %s22
        %v231 = vld [vmem:[%s222] sm:$0xff]
        %v232 = vld [vmem:[%s222 + $0x8] sm:$0xff]
        %v233 = vld [vmem:[%s222 + $0x10] sm:$0xff]
        %v234 = vld [vmem:[%s222 + $0x18] sm:$0xff]
        %v235 = vld [vmem:[%s222 + $0x20] sm:$0xff]
        %v236 = vld [vmem:[%s222 + $0x28] sm:$0xff]
        %v237 = vld [vmem:[%s222 + $0x30] sm:$0xff]
        %v238 = vld [vmem:[%s222 + $0x38] sm:$0xff]
        %v239 = vld [vmem:[%s222 + $0x40] sm:$0xff]
        %v240 = vld [vmem:[%s222 + $0x48] sm:$0xff]
        %v241 = vld [vmem:[%s222 + $0x50] sm:$0xff]
        %v242 = vld [vmem:[%s222 + $0x58] sm:$0xff]
        %v243 = vld [vmem:[%s222 + $0x60] sm:$0xff]
        %v244 = vld [vmem:[%s222 + $0x68] sm:$0xff]
        %v245 = vld [vmem:[%s222 + $0x70] sm:$0xff]
        %v246 = vld [vmem:[%s222 + $0x78] sm:$0xff]
        %v247 = vld [vmem:[%s222 + $0x80] sm:$0xff]
        %v248 = vld [vmem:[%s222 + $0x88] sm:$0xff]
        %v249 = vld [vmem:[%s222 + $0x90] sm:$0xff]
        %v250 = vld [vmem:[%s222 + $0x98] sm:$0xff]
        %v251 = vld [vmem:[%s222 + $0xa0] sm:$0xff]
        %v252 = vld [vmem:[%s222 + $0xa8] sm:$0xff]
        %v253 = vld [vmem:[%s222 + $0xb0] sm:$0xff]
        %v254 = vld [vmem:[%s222 + $0xb8] sm:$0xff]
        %v255 = vld [vmem:[%s222 + $0xc0] sm:$0xff]
        %v256 = vld [vmem:[%s222 + $0xc8] sm:$0xff]
        %v257 = vld [vmem:[%s222 + $0xd0] sm:$0xff]
        %v258 = vld [vmem:[%s222 + $0xd8] sm:$0xff]
        %v259 = vld [vmem:[%s222 + $0xe0] sm:$0xff]
        %v260 = vld [vmem:[%s222 + $0xe8] sm:$0xff]
        %v261 = vld [vmem:[%s222 + $0xf0] sm:$0xff]
        %v262 = vld [vmem:[%s222 + $0xf8] sm:$0xff]
        %v263 = vld [vmem:[%s226] sm:$0x1]
        %v265 = vperm.slane %v263, 0
        %v267 = vmul.f32 %v231, %v265
        %v268 = vmul.f32 %v232, %v265
        %v269 = vmul.f32 %v233, %v265
        %v270 = vmul.f32 %v234, %v265
        %v271 = vmul.f32 %v235, %v265
        %v272 = vmul.f32 %v236, %v265
        %v273 = vmul.f32 %v237, %v265
        %v274 = vmul.f32 %v238, %v265
        %v275 = vmul.f32 %v239, %v265
        %v276 = vmul.f32 %v240, %v265
        %v277 = vmul.f32 %v241, %v265
        %v278 = vmul.f32 %v242, %v265
        %v279 = vmul.f32 %v243, %v265
        %v280 = vmul.f32 %v244, %v265
        %v281 = vmul.f32 %v245, %v265
        %v282 = vmul.f32 %v246, %v265
        %v283 = vmul.f32 %v247, %v265
        %v284 = vmul.f32 %v248, %v265
        %v285 = vmul.f32 %v249, %v265
        %v286 = vmul.f32 %v250, %v265
        %v287 = vmul.f32 %v251, %v265
        %v288 = vmul.f32 %v252, %v265
        %v289 = vmul.f32 %v253, %v265
        %v290 = vmul.f32 %v254, %v265
        %v291 = vmul.f32 %v255, %v265
        %v292 = vmul.f32 %v256, %v265
        %v293 = vmul.f32 %v257, %v265
        %v294 = vmul.f32 %v258, %v265
        %v295 = vmul.f32 %v259, %v265
        %v296 = vmul.f32 %v260, %v265
        %v297 = vmul.f32 %v261, %v265
        %v298 = vmul.f32 %v262, %v265
        %v299 = vld [vmem:[%s229] sm:$0x1]
        %v301 = vperm.slane %v299, 0
        %v303 = vadd.f32 %v267, %v301
        %v304 = vadd.f32 %v268, %v301
        %v305 = vadd.f32 %v269, %v301
        %v306 = vadd.f32 %v270, %v301
        %v307 = vadd.f32 %v271, %v301
        %v308 = vadd.f32 %v272, %v301
        %v309 = vadd.f32 %v273, %v301
        %v310 = vadd.f32 %v274, %v301
        %v311 = vadd.f32 %v275, %v301
        %v312 = vadd.f32 %v276, %v301
        %v313 = vadd.f32 %v277, %v301
        %v314 = vadd.f32 %v278, %v301
        %v315 = vadd.f32 %v279, %v301
        %v316 = vadd.f32 %v280, %v301
        %v317 = vadd.f32 %v281, %v301
        %v318 = vadd.f32 %v282, %v301
        %v319 = vadd.f32 %v283, %v301
        %v320 = vadd.f32 %v284, %v301
        %v321 = vadd.f32 %v285, %v301
        %v322 = vadd.f32 %v286, %v301
        %v323 = vadd.f32 %v287, %v301
        %v324 = vadd.f32 %v288, %v301
        %v325 = vadd.f32 %v289, %v301
        %v326 = vadd.f32 %v290, %v301
        %v327 = vadd.f32 %v291, %v301
        %v328 = vadd.f32 %v292, %v301
        %v329 = vadd.f32 %v293, %v301
        %v330 = vadd.f32 %v294, %v301
        %v331 = vadd.f32 %v295, %v301
        %v332 = vadd.f32 %v296, %v301
        %v333 = vadd.f32 %v297, %v301
        %v334 = vadd.f32 %v298, %v301
        %v335 = vxor.u32 %v303, 2147483648
        %v336 = vxor.u32 %v304, 2147483648
        %v337 = vxor.u32 %v305, 2147483648
        %v338 = vxor.u32 %v306, 2147483648
        %v339 = vxor.u32 %v307, 2147483648
        %v340 = vxor.u32 %v308, 2147483648
        %v341 = vxor.u32 %v309, 2147483648
        %v342 = vxor.u32 %v310, 2147483648
        %v343 = vxor.u32 %v311, 2147483648
        %v344 = vxor.u32 %v312, 2147483648
        %v345 = vxor.u32 %v313, 2147483648
        %v346 = vxor.u32 %v314, 2147483648
        %v347 = vxor.u32 %v315, 2147483648
        %v348 = vxor.u32 %v316, 2147483648
        %v349 = vxor.u32 %v317, 2147483648
        %v350 = vxor.u32 %v318, 2147483648
        %v351 = vxor.u32 %v319, 2147483648
        %v352 = vxor.u32 %v320, 2147483648
        %v353 = vxor.u32 %v321, 2147483648
        %v354 = vxor.u32 %v322, 2147483648
        %v355 = vxor.u32 %v323, 2147483648
        %v356 = vxor.u32 %v324, 2147483648
        %v357 = vxor.u32 %v325, 2147483648
        %v358 = vxor.u32 %v326, 2147483648
        %v359 = vxor.u32 %v327, 2147483648
        %v360 = vxor.u32 %v328, 2147483648
        %v361 = vxor.u32 %v329, 2147483648
        %v362 = vxor.u32 %v330, 2147483648
        %v363 = vxor.u32 %v331, 2147483648
        %v364 = vxor.u32 %v332, 2147483648
        %v365 = vxor.u32 %v333, 2147483648
        %v366 = vxor.u32 %v334, 2147483648
        %v367 = vmul.f32 %v335, 1.442695
        %v368 = vpow.pop %v367
        %v369 = vmul.f32 %v336, 1.442695
        %v370 = vpow.pop %v369
        %v371 = vmul.f32 %v337, 1.442695
        %v372 = vpow.pop %v371
        %v373 = vmul.f32 %v338, 1.442695
        %v374 = vpow.pop %v373
        %v375 = vmul.f32 %v339, 1.442695
        %v376 = vpow.pop %v375
        %v377 = vmul.f32 %v340, 1.442695
        %v378 = vpow.pop %v377
        %v379 = vmul.f32 %v341, 1.442695
        %v380 = vpow.pop %v379
        %v381 = vmul.f32 %v342, 1.442695
        %v382 = vpow.pop %v381
        %v383 = vmul.f32 %v343, 1.442695
        %v384 = vpow.pop %v383
        %v385 = vmul.f32 %v344, 1.442695
        %v386 = vpow.pop %v385
        %v387 = vmul.f32 %v345, 1.442695
        %v388 = vpow.pop %v387
        %v389 = vmul.f32 %v346, 1.442695
        %v390 = vpow.pop %v389
        %v391 = vmul.f32 %v347, 1.442695
        %v392 = vpow.pop %v391
        %v393 = vmul.f32 %v348, 1.442695
        %v394 = vpow.pop %v393
        %v395 = vmul.f32 %v349, 1.442695
        %v396 = vpow.pop %v395
        %v397 = vmul.f32 %v350, 1.442695
        %v398 = vpow.pop %v397
        %v399 = vmul.f32 %v351, 1.442695
        %v400 = vpow.pop %v399
        %v401 = vmul.f32 %v352, 1.442695
        %v402 = vpow.pop %v401
        %v403 = vmul.f32 %v353, 1.442695
        %v404 = vpow.pop %v403
        %v405 = vmul.f32 %v354, 1.442695
        %v406 = vpow.pop %v405
        %v407 = vmul.f32 %v355, 1.442695
        %v408 = vpow.pop %v407
        %v409 = vmul.f32 %v356, 1.442695
        %v410 = vpow.pop %v409
        %v411 = vmul.f32 %v357, 1.442695
        %v412 = vpow.pop %v411
        %v413 = vmul.f32 %v358, 1.442695
        %v414 = vpow.pop %v413
        %v415 = vmul.f32 %v359, 1.442695
        %v416 = vpow.pop %v415
        %v417 = vmul.f32 %v360, 1.442695
        %v418 = vpow.pop %v417
        %v419 = vmul.f32 %v361, 1.442695
        %v420 = vpow.pop %v419
        %v421 = vmul.f32 %v362, 1.442695
        %v422 = vpow.pop %v421
        %v423 = vmul.f32 %v363, 1.442695
        %v424 = vpow.pop %v423
        %v425 = vmul.f32 %v364, 1.442695
        %v426 = vpow.pop %v425
        %v427 = vmul.f32 %v365, 1.442695
        %v428 = vpow.pop %v427
        %v429 = vmul.f32 %v366, 1.442695
        %v430 = vpow.pop %v429
        %v431 = vadd.f32 %v368, 1.0
        %v432 = vadd.f32 %v370, 1.0
        %v433 = vadd.f32 %v372, 1.0
        %v434 = vadd.f32 %v374, 1.0
        %v435 = vadd.f32 %v376, 1.0
        %v436 = vadd.f32 %v378, 1.0
        %v437 = vadd.f32 %v380, 1.0
        %v438 = vadd.f32 %v382, 1.0
        %v439 = vadd.f32 %v384, 1.0
        %v440 = vadd.f32 %v386, 1.0
        %v441 = vadd.f32 %v388, 1.0
        %v442 = vadd.f32 %v390, 1.0
        %v443 = vadd.f32 %v392, 1.0
        %v444 = vadd.f32 %v394, 1.0
        %v445 = vadd.f32 %v396, 1.0
        %v446 = vadd.f32 %v398, 1.0
        %v447 = vadd.f32 %v400, 1.0
        %v448 = vadd.f32 %v402, 1.0
        %v449 = vadd.f32 %v404, 1.0
        %v450 = vadd.f32 %v406, 1.0
        %v451 = vadd.f32 %v408, 1.0
        %v452 = vadd.f32 %v410, 1.0
        %v453 = vadd.f32 %v412, 1.0
        %v454 = vadd.f32 %v414, 1.0
        %v455 = vadd.f32 %v416, 1.0
        %v456 = vadd.f32 %v418, 1.0
        %v457 = vadd.f32 %v420, 1.0
        %v458 = vadd.f32 %v422, 1.0
        %v459 = vadd.f32 %v424, 1.0
        %v460 = vadd.f32 %v426, 1.0
        %v461 = vadd.f32 %v428, 1.0
        %v462 = vadd.f32 %v430, 1.0
        %v463 = vrcp.pop %v431
        %v464 = vmul.f32 %v431, %v463
        %v465 = vsub.f32 1.0, %v464
        %v466 = vmul.f32 %v463, %v465
        %v467 = vadd.f32 %v463, %v466
        %vm468 = vweird.f32 %v431
        %vm469 = vweird.f32 %v463
        %vm470 = vmor %vm468, %vm469
        %v471 = vsel %vm470, %v463, %v467
        %v472 = vand.u32 2147483647, %v431
        %vm473 = vcmp.eq.f32.partialorder %v472, 8.507059e+37
        %v474 = vand.u32 %v431, 2147483648
        %v475 = vor.u32 1.1754944e-38, %v474
        %v476 = vsel %vm473, %v475, %v471
        %v477 = vmul.f32 1.0, %v476
        %v478 = vrcp.pop %v432
        %v479 = vmul.f32 %v432, %v478
        %v480 = vsub.f32 1.0, %v479
        %v481 = vmul.f32 %v478, %v480
        %v482 = vadd.f32 %v478, %v481
        %vm483 = vweird.f32 %v432
        %vm484 = vweird.f32 %v478
        %vm485 = vmor %vm483, %vm484
        %v486 = vsel %vm485, %v478, %v482
        %v487 = vand.u32 2147483647, %v432
        %vm488 = vcmp.eq.f32.partialorder %v487, 8.507059e+37
        %v489 = vand.u32 %v432, 2147483648
        %v490 = vor.u32 1.1754944e-38, %v489
        %v491 = vsel %vm488, %v490, %v486
        %v492 = vmul.f32 1.0, %v491
        %v493 = vrcp.pop %v433
        %v494 = vmul.f32 %v433, %v493
        %v495 = vsub.f32 1.0, %v494
        %v496 = vmul.f32 %v493, %v495
        %v497 = vadd.f32 %v493, %v496
        %vm498 = vweird.f32 %v433
        %vm499 = vweird.f32 %v493
        %vm500 = vmor %vm498, %vm499
        %v501 = vsel %vm500, %v493, %v497
        %v502 = vand.u32 2147483647, %v433
        %vm503 = vcmp.eq.f32.partialorder %v502, 8.507059e+37
        %v504 = vand.u32 %v433, 2147483648
        %v505 = vor.u32 1.1754944e-38, %v504
        %v506 = vsel %vm503, %v505, %v501
        %v507 = vmul.f32 1.0, %v506
        %v508 = vrcp.pop %v434
        %v509 = vmul.f32 %v434, %v508
        %v510 = vsub.f32 1.0, %v509
        %v511 = vmul.f32 %v508, %v510
        %v512 = vadd.f32 %v508, %v511
        %vm513 = vweird.f32 %v434
        %vm514 = vweird.f32 %v508
        %vm515 = vmor %vm513, %vm514
        %v516 = vsel %vm515, %v508, %v512
        %v517 = vand.u32 2147483647, %v434
        %vm518 = vcmp.eq.f32.partialorder %v517, 8.507059e+37
        %v519 = vand.u32 %v434, 2147483648
        %v520 = vor.u32 1.1754944e-38, %v519
        %v521 = vsel %vm518, %v520, %v516
        %v522 = vmul.f32 1.0, %v521
        %v523 = vrcp.pop %v435
        %v524 = vmul.f32 %v435, %v523
        %v525 = vsub.f32 1.0, %v524
        %v526 = vmul.f32 %v523, %v525
        %v527 = vadd.f32 %v523, %v526
        %vm528 = vweird.f32 %v435
        %vm529 = vweird.f32 %v523
        %vm530 = vmor %vm528, %vm529
        %v531 = vsel %vm530, %v523, %v527
        %v532 = vand.u32 2147483647, %v435
        %vm533 = vcmp.eq.f32.partialorder %v532, 8.507059e+37
        %v534 = vand.u32 %v435, 2147483648
        %v535 = vor.u32 1.1754944e-38, %v534
        %v536 = vsel %vm533, %v535, %v531
        %v537 = vmul.f32 1.0, %v536
        %v538 = vrcp.pop %v436
        %v539 = vmul.f32 %v436, %v538
        %v540 = vsub.f32 1.0, %v539
        %v541 = vmul.f32 %v538, %v540
        %v542 = vadd.f32 %v538, %v541
        %vm543 = vweird.f32 %v436
        %vm544 = vweird.f32 %v538
        %vm545 = vmor %vm543, %vm544
        %v546 = vsel %vm545, %v538, %v542
        %v547 = vand.u32 2147483647, %v436
        %vm548 = vcmp.eq.f32.partialorder %v547, 8.507059e+37
        %v549 = vand.u32 %v436, 2147483648
        %v550 = vor.u32 1.1754944e-38, %v549
        %v551 = vsel %vm548, %v550, %v546
        %v552 = vmul.f32 1.0, %v551
        %v553 = vrcp.pop %v437
        %v554 = vmul.f32 %v437, %v553
        %v555 = vsub.f32 1.0, %v554
        %v556 = vmul.f32 %v553, %v555
        %v557 = vadd.f32 %v553, %v556
        %vm558 = vweird.f32 %v437
        %vm559 = vweird.f32 %v553
        %vm560 = vmor %vm558, %vm559
        %v561 = vsel %vm560, %v553, %v557
        %v562 = vand.u32 2147483647, %v437
        %vm563 = vcmp.eq.f32.partialorder %v562, 8.507059e+37
        %v564 = vand.u32 %v437, 2147483648
        %v565 = vor.u32 1.1754944e-38, %v564
        %v566 = vsel %vm563, %v565, %v561
        %v567 = vmul.f32 1.0, %v566
        %v568 = vrcp.pop %v438
        %v569 = vmul.f32 %v438, %v568
        %v570 = vsub.f32 1.0, %v569
        %v571 = vmul.f32 %v568, %v570
        %v572 = vadd.f32 %v568, %v571
        %vm573 = vweird.f32 %v438
        %vm574 = vweird.f32 %v568
        %vm575 = vmor %vm573, %vm574
        %v576 = vsel %vm575, %v568, %v572
        %v577 = vand.u32 2147483647, %v438
        %vm578 = vcmp.eq.f32.partialorder %v577, 8.507059e+37
        %v579 = vand.u32 %v438, 2147483648
        %v580 = vor.u32 1.1754944e-38, %v579
        %v581 = vsel %vm578, %v580, %v576
        %v582 = vmul.f32 1.0, %v581
        %v583 = vrcp.pop %v439
        %v584 = vmul.f32 %v439, %v583
        %v585 = vsub.f32 1.0, %v584
        %v586 = vmul.f32 %v583, %v585
        %v587 = vadd.f32 %v583, %v586
        %vm588 = vweird.f32 %v439
        %vm589 = vweird.f32 %v583
        %vm590 = vmor %vm588, %vm589
        %v591 = vsel %vm590, %v583, %v587
        %v592 = vand.u32 2147483647, %v439
        %vm593 = vcmp.eq.f32.partialorder %v592, 8.507059e+37
        %v594 = vand.u32 %v439, 2147483648
        %v595 = vor.u32 1.1754944e-38, %v594
        %v596 = vsel %vm593, %v595, %v591
        %v597 = vmul.f32 1.0, %v596
        %v598 = vrcp.pop %v440
        %v599 = vmul.f32 %v440, %v598
        %v600 = vsub.f32 1.0, %v599
        %v601 = vmul.f32 %v598, %v600
        %v602 = vadd.f32 %v598, %v601
        %vm603 = vweird.f32 %v440
        %vm604 = vweird.f32 %v598
        %vm605 = vmor %vm603, %vm604
        %v606 = vsel %vm605, %v598, %v602
        %v607 = vand.u32 2147483647, %v440
        %vm608 = vcmp.eq.f32.partialorder %v607, 8.507059e+37
        %v609 = vand.u32 %v440, 2147483648
        %v610 = vor.u32 1.1754944e-38, %v609
        %v611 = vsel %vm608, %v610, %v606
        %v612 = vmul.f32 1.0, %v611
        %v613 = vrcp.pop %v441
        %v614 = vmul.f32 %v441, %v613
        %v615 = vsub.f32 1.0, %v614
        %v616 = vmul.f32 %v613, %v615
        %v617 = vadd.f32 %v613, %v616
        %vm618 = vweird.f32 %v441
        %vm619 = vweird.f32 %v613
        %vm620 = vmor %vm618, %vm619
        %v621 = vsel %vm620, %v613, %v617
        %v622 = vand.u32 2147483647, %v441
        %vm623 = vcmp.eq.f32.partialorder %v622, 8.507059e+37
        %v624 = vand.u32 %v441, 2147483648
        %v625 = vor.u32 1.1754944e-38, %v624
        %v626 = vsel %vm623, %v625, %v621
        %v627 = vmul.f32 1.0, %v626
        %v628 = vrcp.pop %v442
        %v629 = vmul.f32 %v442, %v628
        %v630 = vsub.f32 1.0, %v629
        %v631 = vmul.f32 %v628, %v630
        %v632 = vadd.f32 %v628, %v631
        %vm633 = vweird.f32 %v442
        %vm634 = vweird.f32 %v628
        %vm635 = vmor %vm633, %vm634
        %v636 = vsel %vm635, %v628, %v632
        %v637 = vand.u32 2147483647, %v442
        %vm638 = vcmp.eq.f32.partialorder %v637, 8.507059e+37
        %v639 = vand.u32 %v442, 2147483648
        %v640 = vor.u32 1.1754944e-38, %v639
        %v641 = vsel %vm638, %v640, %v636
        %v642 = vmul.f32 1.0, %v641
        %v643 = vrcp.pop %v443
        %v644 = vmul.f32 %v443, %v643
        %v645 = vsub.f32 1.0, %v644
        %v646 = vmul.f32 %v643, %v645
        %v647 = vadd.f32 %v643, %v646
        %vm648 = vweird.f32 %v443
        %vm649 = vweird.f32 %v643
        %vm650 = vmor %vm648, %vm649
        %v651 = vsel %vm650, %v643, %v647
        %v652 = vand.u32 2147483647, %v443
        %vm653 = vcmp.eq.f32.partialorder %v652, 8.507059e+37
        %v654 = vand.u32 %v443, 2147483648
        %v655 = vor.u32 1.1754944e-38, %v654
        %v656 = vsel %vm653, %v655, %v651
        %v657 = vmul.f32 1.0, %v656
        %v658 = vrcp.pop %v444
        %v659 = vmul.f32 %v444, %v658
        %v660 = vsub.f32 1.0, %v659
        %v661 = vmul.f32 %v658, %v660
        %v662 = vadd.f32 %v658, %v661
        %vm663 = vweird.f32 %v444
        %vm664 = vweird.f32 %v658
        %vm665 = vmor %vm663, %vm664
        %v666 = vsel %vm665, %v658, %v662
        %v667 = vand.u32 2147483647, %v444
        %vm668 = vcmp.eq.f32.partialorder %v667, 8.507059e+37
        %v669 = vand.u32 %v444, 2147483648
        %v670 = vor.u32 1.1754944e-38, %v669
        %v671 = vsel %vm668, %v670, %v666
        %v672 = vmul.f32 1.0, %v671
        %v673 = vrcp.pop %v445
        %v674 = vmul.f32 %v445, %v673
        %v675 = vsub.f32 1.0, %v674
        %v676 = vmul.f32 %v673, %v675
        %v677 = vadd.f32 %v673, %v676
        %vm678 = vweird.f32 %v445
        %vm679 = vweird.f32 %v673
        %vm680 = vmor %vm678, %vm679
        %v681 = vsel %vm680, %v673, %v677
        %v682 = vand.u32 2147483647, %v445
        %vm683 = vcmp.eq.f32.partialorder %v682, 8.507059e+37
        %v684 = vand.u32 %v445, 2147483648
        %v685 = vor.u32 1.1754944e-38, %v684
        %v686 = vsel %vm683, %v685, %v681
        %v687 = vmul.f32 1.0, %v686
        %v688 = vrcp.pop %v446
        %v689 = vmul.f32 %v446, %v688
        %v690 = vsub.f32 1.0, %v689
        %v691 = vmul.f32 %v688, %v690
        %v692 = vadd.f32 %v688, %v691
        %vm693 = vweird.f32 %v446
        %vm694 = vweird.f32 %v688
        %vm695 = vmor %vm693, %vm694
        %v696 = vsel %vm695, %v688, %v692
        %v697 = vand.u32 2147483647, %v446
        %vm698 = vcmp.eq.f32.partialorder %v697, 8.507059e+37
        %v699 = vand.u32 %v446, 2147483648
        %v700 = vor.u32 1.1754944e-38, %v699
        %v701 = vsel %vm698, %v700, %v696
        %v702 = vmul.f32 1.0, %v701
        %v703 = vrcp.pop %v447
        %v704 = vmul.f32 %v447, %v703
        %v705 = vsub.f32 1.0, %v704
        %v706 = vmul.f32 %v703, %v705
        %v707 = vadd.f32 %v703, %v706
        %vm708 = vweird.f32 %v447
        %vm709 = vweird.f32 %v703
        %vm710 = vmor %vm708, %vm709
        %v711 = vsel %vm710, %v703, %v707
        %v712 = vand.u32 2147483647, %v447
        %vm713 = vcmp.eq.f32.partialorder %v712, 8.507059e+37
        %v714 = vand.u32 %v447, 2147483648
        %v715 = vor.u32 1.1754944e-38, %v714
        %v716 = vsel %vm713, %v715, %v711
        %v717 = vmul.f32 1.0, %v716
        %v718 = vrcp.pop %v448
        %v719 = vmul.f32 %v448, %v718
        %v720 = vsub.f32 1.0, %v719
        %v721 = vmul.f32 %v718, %v720
        %v722 = vadd.f32 %v718, %v721
        %vm723 = vweird.f32 %v448
        %vm724 = vweird.f32 %v718
        %vm725 = vmor %vm723, %vm724
        %v726 = vsel %vm725, %v718, %v722
        %v727 = vand.u32 2147483647, %v448
        %vm728 = vcmp.eq.f32.partialorder %v727, 8.507059e+37
        %v729 = vand.u32 %v448, 2147483648
        %v730 = vor.u32 1.1754944e-38, %v729
        %v731 = vsel %vm728, %v730, %v726
        %v732 = vmul.f32 1.0, %v731
        %v733 = vrcp.pop %v449
        %v734 = vmul.f32 %v449, %v733
        %v735 = vsub.f32 1.0, %v734
        %v736 = vmul.f32 %v733, %v735
        %v737 = vadd.f32 %v733, %v736
        %vm738 = vweird.f32 %v449
        %vm739 = vweird.f32 %v733
        %vm740 = vmor %vm738, %vm739
        %v741 = vsel %vm740, %v733, %v737
        %v742 = vand.u32 2147483647, %v449
        %vm743 = vcmp.eq.f32.partialorder %v742, 8.507059e+37
        %v744 = vand.u32 %v449, 2147483648
        %v745 = vor.u32 1.1754944e-38, %v744
        %v746 = vsel %vm743, %v745, %v741
        %v747 = vmul.f32 1.0, %v746
        %v748 = vrcp.pop %v450
        %v749 = vmul.f32 %v450, %v748
        %v750 = vsub.f32 1.0, %v749
        %v751 = vmul.f32 %v748, %v750
        %v752 = vadd.f32 %v748, %v751
        %vm753 = vweird.f32 %v450
        %vm754 = vweird.f32 %v748
        %vm755 = vmor %vm753, %vm754
        %v756 = vsel %vm755, %v748, %v752
        %v757 = vand.u32 2147483647, %v450
        %vm758 = vcmp.eq.f32.partialorder %v757, 8.507059e+37
        %v759 = vand.u32 %v450, 2147483648
        %v760 = vor.u32 1.1754944e-38, %v759
        %v761 = vsel %vm758, %v760, %v756
        %v762 = vmul.f32 1.0, %v761
        %v763 = vrcp.pop %v451
        %v764 = vmul.f32 %v451, %v763
        %v765 = vsub.f32 1.0, %v764
        %v766 = vmul.f32 %v763, %v765
        %v767 = vadd.f32 %v763, %v766
        %vm768 = vweird.f32 %v451
        %vm769 = vweird.f32 %v763
        %vm770 = vmor %vm768, %vm769
        %v771 = vsel %vm770, %v763, %v767
        %v772 = vand.u32 2147483647, %v451
        %vm773 = vcmp.eq.f32.partialorder %v772, 8.507059e+37
        %v774 = vand.u32 %v451, 2147483648
        %v775 = vor.u32 1.1754944e-38, %v774
        %v776 = vsel %vm773, %v775, %v771
        %v777 = vmul.f32 1.0, %v776
        %v778 = vrcp.pop %v452
        %v779 = vmul.f32 %v452, %v778
        %v780 = vsub.f32 1.0, %v779
        %v781 = vmul.f32 %v778, %v780
        %v782 = vadd.f32 %v778, %v781
        %vm783 = vweird.f32 %v452
        %vm784 = vweird.f32 %v778
        %vm785 = vmor %vm783, %vm784
        %v786 = vsel %vm785, %v778, %v782
        %v787 = vand.u32 2147483647, %v452
        %vm788 = vcmp.eq.f32.partialorder %v787, 8.507059e+37
        %v789 = vand.u32 %v452, 2147483648
        %v790 = vor.u32 1.1754944e-38, %v789
        %v791 = vsel %vm788, %v790, %v786
        %v792 = vmul.f32 1.0, %v791
        %v793 = vrcp.pop %v453
        %v794 = vmul.f32 %v453, %v793
        %v795 = vsub.f32 1.0, %v794
        %v796 = vmul.f32 %v793, %v795
        %v797 = vadd.f32 %v793, %v796
        %vm798 = vweird.f32 %v453
        %vm799 = vweird.f32 %v793
        %vm800 = vmor %vm798, %vm799
        %v801 = vsel %vm800, %v793, %v797
        %v802 = vand.u32 2147483647, %v453
        %vm803 = vcmp.eq.f32.partialorder %v802, 8.507059e+37
        %v804 = vand.u32 %v453, 2147483648
        %v805 = vor.u32 1.1754944e-38, %v804
        %v806 = vsel %vm803, %v805, %v801
        %v807 = vmul.f32 1.0, %v806
        %v808 = vrcp.pop %v454
        %v809 = vmul.f32 %v454, %v808
        %v810 = vsub.f32 1.0, %v809
        %v811 = vmul.f32 %v808, %v810
        %v812 = vadd.f32 %v808, %v811
        %vm813 = vweird.f32 %v454
        %vm814 = vweird.f32 %v808
        %vm815 = vmor %vm813, %vm814
        %v816 = vsel %vm815, %v808, %v812
        %v817 = vand.u32 2147483647, %v454
        %vm818 = vcmp.eq.f32.partialorder %v817, 8.507059e+37
        %v819 = vand.u32 %v454, 2147483648
        %v820 = vor.u32 1.1754944e-38, %v819
        %v821 = vsel %vm818, %v820, %v816
        %v822 = vmul.f32 1.0, %v821
        %v823 = vrcp.pop %v455
        %v824 = vmul.f32 %v455, %v823
        %v825 = vsub.f32 1.0, %v824
        %v826 = vmul.f32 %v823, %v825
        %v827 = vadd.f32 %v823, %v826
        %vm828 = vweird.f32 %v455
        %vm829 = vweird.f32 %v823
        %vm830 = vmor %vm828, %vm829
        %v831 = vsel %vm830, %v823, %v827
        %v832 = vand.u32 2147483647, %v455
        %vm833 = vcmp.eq.f32.partialorder %v832, 8.507059e+37
        %v834 = vand.u32 %v455, 2147483648
        %v835 = vor.u32 1.1754944e-38, %v834
        %v836 = vsel %vm833, %v835, %v831
        %v837 = vmul.f32 1.0, %v836
        %v838 = vrcp.pop %v456
        %v839 = vmul.f32 %v456, %v838
        %v840 = vsub.f32 1.0, %v839
        %v841 = vmul.f32 %v838, %v840
        %v842 = vadd.f32 %v838, %v841
        %vm843 = vweird.f32 %v456
        %vm844 = vweird.f32 %v838
        %vm845 = vmor %vm843, %vm844
        %v846 = vsel %vm845, %v838, %v842
        %v847 = vand.u32 2147483647, %v456
        %vm848 = vcmp.eq.f32.partialorder %v847, 8.507059e+37
        %v849 = vand.u32 %v456, 2147483648
        %v850 = vor.u32 1.1754944e-38, %v849
        %v851 = vsel %vm848, %v850, %v846
        %v852 = vmul.f32 1.0, %v851
        %v853 = vrcp.pop %v457
        %v854 = vmul.f32 %v457, %v853
        %v855 = vsub.f32 1.0, %v854
        %v856 = vmul.f32 %v853, %v855
        %v857 = vadd.f32 %v853, %v856
        %vm858 = vweird.f32 %v457
        %vm859 = vweird.f32 %v853
        %vm860 = vmor %vm858, %vm859
        %v861 = vsel %vm860, %v853, %v857
        %v862 = vand.u32 2147483647, %v457
        %vm863 = vcmp.eq.f32.partialorder %v862, 8.507059e+37
        %v864 = vand.u32 %v457, 2147483648
        %v865 = vor.u32 1.1754944e-38, %v864
        %v866 = vsel %vm863, %v865, %v861
        %v867 = vmul.f32 1.0, %v866
        %v868 = vrcp.pop %v458
        %v869 = vmul.f32 %v458, %v868
        %v870 = vsub.f32 1.0, %v869
        %v871 = vmul.f32 %v868, %v870
        %v872 = vadd.f32 %v868, %v871
        %vm873 = vweird.f32 %v458
        %vm874 = vweird.f32 %v868
        %vm875 = vmor %vm873, %vm874
        %v876 = vsel %vm875, %v868, %v872
        %v877 = vand.u32 2147483647, %v458
        %vm878 = vcmp.eq.f32.partialorder %v877, 8.507059e+37
        %v879 = vand.u32 %v458, 2147483648
        %v880 = vor.u32 1.1754944e-38, %v879
        %v881 = vsel %vm878, %v880, %v876
        %v882 = vmul.f32 1.0, %v881
        %v883 = vrcp.pop %v459
        %v884 = vmul.f32 %v459, %v883
        %v885 = vsub.f32 1.0, %v884
        %v886 = vmul.f32 %v883, %v885
        %v887 = vadd.f32 %v883, %v886
        %vm888 = vweird.f32 %v459
        %vm889 = vweird.f32 %v883
        %vm890 = vmor %vm888, %vm889
        %v891 = vsel %vm890, %v883, %v887
        %v892 = vand.u32 2147483647, %v459
        %vm893 = vcmp.eq.f32.partialorder %v892, 8.507059e+37
        %v894 = vand.u32 %v459, 2147483648
        %v895 = vor.u32 1.1754944e-38, %v894
        %v896 = vsel %vm893, %v895, %v891
        %v897 = vmul.f32 1.0, %v896
        %v898 = vrcp.pop %v460
        %v899 = vmul.f32 %v460, %v898
        %v900 = vsub.f32 1.0, %v899
        %v901 = vmul.f32 %v898, %v900
        %v902 = vadd.f32 %v898, %v901
        %vm903 = vweird.f32 %v460
        %vm904 = vweird.f32 %v898
        %vm905 = vmor %vm903, %vm904
        %v906 = vsel %vm905, %v898, %v902
        %v907 = vand.u32 2147483647, %v460
        %vm908 = vcmp.eq.f32.partialorder %v907, 8.507059e+37
        %v909 = vand.u32 %v460, 2147483648
        %v910 = vor.u32 1.1754944e-38, %v909
        %v911 = vsel %vm908, %v910, %v906
        %v912 = vmul.f32 1.0, %v911
        %v913 = vrcp.pop %v461
        %v914 = vmul.f32 %v461, %v913
        %v915 = vsub.f32 1.0, %v914
        %v916 = vmul.f32 %v913, %v915
        %v917 = vadd.f32 %v913, %v916
        %vm918 = vweird.f32 %v461
        %vm919 = vweird.f32 %v913
        %vm920 = vmor %vm918, %vm919
        %v921 = vsel %vm920, %v913, %v917
        %v922 = vand.u32 2147483647, %v461
        %vm923 = vcmp.eq.f32.partialorder %v922, 8.507059e+37
        %v924 = vand.u32 %v461, 2147483648
        %v925 = vor.u32 1.1754944e-38, %v924
        %v926 = vsel %vm923, %v925, %v921
        %v927 = vmul.f32 1.0, %v926
        %v928 = vrcp.pop %v462
        %v929 = vmul.f32 %v462, %v928
        %v930 = vsub.f32 1.0, %v929
        %v931 = vmul.f32 %v928, %v930
        %v932 = vadd.f32 %v928, %v931
        %vm933 = vweird.f32 %v462
        %vm934 = vweird.f32 %v928
        %vm935 = vmor %vm933, %vm934
        %v936 = vsel %vm935, %v928, %v932
        %v937 = vand.u32 2147483647, %v462
        %vm938 = vcmp.eq.f32.partialorder %v937, 8.507059e+37
        %v939 = vand.u32 %v462, 2147483648
        %v940 = vor.u32 1.1754944e-38, %v939
        %v941 = vsel %vm938, %v940, %v936
        %v942 = vmul.f32 1.0, %v941
        %v943 = vmul.f32 %v303, %v477
        %v944 = vmul.f32 %v304, %v492
        %v945 = vmul.f32 %v305, %v507
        %v946 = vmul.f32 %v306, %v522
        %v947 = vmul.f32 %v307, %v537
        %v948 = vmul.f32 %v308, %v552
        %v949 = vmul.f32 %v309, %v567
        %v950 = vmul.f32 %v310, %v582
        %v951 = vmul.f32 %v311, %v597
        %v952 = vmul.f32 %v312, %v612
        %v953 = vmul.f32 %v313, %v627
        %v954 = vmul.f32 %v314, %v642
        %v955 = vmul.f32 %v315, %v657
        %v956 = vmul.f32 %v316, %v672
        %v957 = vmul.f32 %v317, %v687
        %v958 = vmul.f32 %v318, %v702
        %v959 = vmul.f32 %v319, %v717
        %v960 = vmul.f32 %v320, %v732
        %v961 = vmul.f32 %v321, %v747
        %v962 = vmul.f32 %v322, %v762
        %v963 = vmul.f32 %v323, %v777
        %v964 = vmul.f32 %v324, %v792
        %v965 = vmul.f32 %v325, %v807
        %v966 = vmul.f32 %v326, %v822
        %v967 = vmul.f32 %v327, %v837
        %v968 = vmul.f32 %v328, %v852
        %v969 = vmul.f32 %v329, %v867
        %v970 = vmul.f32 %v330, %v882
        %v971 = vmul.f32 %v331, %v897
        %v972 = vmul.f32 %v332, %v912
        %v973 = vmul.f32 %v333, %v927
        %v974 = vmul.f32 %v334, %v942
        %vm975 = vcmask 261120
        %976 = vst.msk [vmem:[%s212] sm:$0xff] %vm975, %v943
        %977 = vst.msk [vmem:[%s212 + $0x8] sm:$0xff] %vm975, %v944
        %978 = vst.msk [vmem:[%s212 + $0x10] sm:$0xff] %vm975, %v945
        %979 = vst.msk [vmem:[%s212 + $0x18] sm:$0xff] %vm975, %v946
        %980 = vst.msk [vmem:[%s212 + $0x20] sm:$0xff] %vm975, %v947
        %981 = vst.msk [vmem:[%s212 + $0x28] sm:$0xff] %vm975, %v948
        %982 = vst.msk [vmem:[%s212 + $0x30] sm:$0xff] %vm975, %v949
        %983 = vst.msk [vmem:[%s212 + $0x38] sm:$0xff] %vm975, %v950
        %984 = vst.msk [vmem:[%s212 + $0x40] sm:$0xff] %vm975, %v951
        %985 = vst.msk [vmem:[%s212 + $0x48] sm:$0xff] %vm975, %v952
        %986 = vst.msk [vmem:[%s212 + $0x50] sm:$0xff] %vm975, %v953
        %987 = vst.msk [vmem:[%s212 + $0x58] sm:$0xff] %vm975, %v954
        %988 = vst.msk [vmem:[%s212 + $0x60] sm:$0xff] %vm975, %v955
        %989 = vst.msk [vmem:[%s212 + $0x68] sm:$0xff] %vm975, %v956
        %990 = vst.msk [vmem:[%s212 + $0x70] sm:$0xff] %vm975, %v957
        %991 = vst.msk [vmem:[%s212 + $0x78] sm:$0xff] %vm975, %v958
        %992 = vst.msk [vmem:[%s212 + $0x80] sm:$0xff] %vm975, %v959
        %993 = vst.msk [vmem:[%s212 + $0x88] sm:$0xff] %vm975, %v960
        %994 = vst.msk [vmem:[%s212 + $0x90] sm:$0xff] %vm975, %v961
        %995 = vst.msk [vmem:[%s212 + $0x98] sm:$0xff] %vm975, %v962
        %996 = vst.msk [vmem:[%s212 + $0xa0] sm:$0xff] %vm975, %v963
        %997 = vst.msk [vmem:[%s212 + $0xa8] sm:$0xff] %vm975, %v964
        %998 = vst.msk [vmem:[%s212 + $0xb0] sm:$0xff] %vm975, %v965
        %999 = vst.msk [vmem:[%s212 + $0xb8] sm:$0xff] %vm975, %v966
        %1000 = vst.msk [vmem:[%s212 + $0xc0] sm:$0xff] %vm975, %v967
        %1001 = vst.msk [vmem:[%s212 + $0xc8] sm:$0xff] %vm975, %v968
        %1002 = vst.msk [vmem:[%s212 + $0xd0] sm:$0xff] %vm975, %v969
        %1003 = vst.msk [vmem:[%s212 + $0xd8] sm:$0xff] %vm975, %v970
        %1004 = vst.msk [vmem:[%s212 + $0xe0] sm:$0xff] %vm975, %v971
        %1005 = vst.msk [vmem:[%s212 + $0xe8] sm:$0xff] %vm975, %v972
        %1006 = vst.msk [vmem:[%s212 + $0xf0] sm:$0xff] %vm975, %v973
        %1007 = vst.msk [vmem:[%s212 + $0xf8] sm:$0xff] %vm975, %v974
        %s1008 = sand.u32 %s119, 1
        %s1009 = scalar_lea.sflag [#allocation3], %s1008
        %s1010 = sand.u32 %s119, 1
        %s1011 = smul.addr %s1010, 256
        %s1012 = scalar_lea.vmem [#allocation2], %s1011
        // Predicated region
        $region33: #{block_forward.3} parent=31 // pred_check
          %p1013 = pneg %p129
        $region34: #{block_forward.3} parent=31 // pred_check_branch
          %1015 = sbr.rel (%p1013) target = $region36
        $region35: #{block_forward.3} parent=31 // pred_region
          %s1016 = smul.u32 16, %s22
          %1018 = vsyncadd %s1009, 0
          %s1019 = smul.addr %s1016, 2
          %s1020 = smul.addr %s21, 32
          %s1021 = sadd.s32 %s1019, %s1020
          %s1022 = smul.addr %s1021, 8
          %s1023 = scalar_lea.hbm %s3, %s1022
          %s1024 = sshll.u32 %s1012, 4
          %s1025 = int_to_ptr.vmem [resolvable:$true] %s1024
          %s1026 = sshll.u32 %s1023, 4
          %s1027 = int_to_ptr.hbm [resolvable:$true] %s1026
          %1032 = dma.vmem_to_hbm [thread:$0]  %s1025, 4096, %s1027, %s1009, 128, 128, 8
        $region36: #{block_forward.3} parent=31 // pred_fallthru
          _
      $region32: #{block_forward.3} parent=5 // pred_fallthru
        _
      %p1033 = scmp.le.s32.totalorder 2, %s12
      // Predicated region
      $region37: #{block_forward.3} parent=5 // pred_check
        %p1034 = pneg %p1033
      $region38: #{block_forward.3} parent=5 // pred_check_branch
        %1036 = sbr.rel (%p1034) target = $region40
      $region39: #{block_forward.3} parent=5 // pred_region
        %s1037 = ssub.s32 %s12, 2
        // Predicated region
        $region41: #{block_forward.3} parent=39 // pred_check
          %p1038 = pneg %p135
        $region42: #{block_forward.3} parent=39 // pred_check_branch
          %1040 = sbr.rel (%p1038) target = $region44
        $region43: #{block_forward.3} parent=39 // pred_region
          %s1041 = sand.u32 %s120, 1
          %s1042 = scalar_lea.sflag [#allocation3], %s1041
          %s1043 = sand.u32 %s120, 1
          %s1044 = smul.addr %s1043, 256
          %s1045 = scalar_lea.vmem [#allocation2], %s1044
          %1047 = dma.done %s1042, 4096
        $region44: #{block_forward.3} parent=39 // pred_fallthru
          _
      $region40: #{block_forward.3} parent=5 // pred_fallthru
        _
    $region6: #{block_forward.3} parent=1 // loop_footer
      %s16 = sadd.s32 1, %s12
    $region7: #{block_forward.3} parent=1 // loop_footer_branch
      %11 = sbr.rel target = $region3
    $region8: #{block_forward.3} parent=1 // loop_exit
      _
    %1048 = vsyncpa [#allocation3], 1
    %s1049 = scalar_lea.sflag [#allocation3], 1
    %1050 = vsyncpa %s1049, 1

</llo_original>
